<compile_context>
chip_gen: v7x
topology: tpu7x:2x2x1
jax: 0.10.0
libtpu: 0.0.40
codegen_flags: <defaults>
</compile_context>

<pallas_src>
import jax
import jax.numpy as jnp
from jax.experimental import pallas as pl
from jax.experimental.pallas import tpu as pltpu


def _round_up(v: int, m: int) -> int:
    return (v + m - 1) // m * m


def _tpu_generation() -> int:
    """Best-effort TPU generation from device_kind (5 / 6 / 7)."""
    try:
        kind = jax.devices()[0].device_kind.lower()
    except Exception:
        return 6
    if "v5" in kind:
        return 5
    if "v6" in kind:
        return 6
    if "v7" in kind or "7x" in kind:
        return 7
    return 6  # unknown: assume a modern chip (bf16 VPU/EUP, moderate VMEM)


def _vmem_estimate(tm: int, d: int, h_pad: int, x_isz: int, act_isz: int) -> int:
    """Rough per-step VMEM footprint for the chosen tile (bytes)."""
    x_buf = 2 * tm * d * x_isz                      # double-buffered x row tile
    w_buf = 2 * d * (2 * h_pad) * 2                 # fused bf16 weights (<=2 bufs)
    small = 2 * (2 * h_pad) * 4 + 2 * h_pad * act_isz   # biases + wc
    out_buf = 2 * tm * 4                            # lane-dense output rows
    interm = tm * (2 * h_pad) * (4 + 2 * act_isz)   # z (f32) + gate temporaries
    return x_buf + w_buf + small + out_buf + interm


def gated_attention_kernel(x_ref, wab_ref, bab_ref, wc_ref, bc_ref, a_out_ref):
    """One grid step processes a (TM, D) row tile of x.

    z    = x @ [Wa | Wb] + [ba | bb]            (TM, 2H), f32 accumulation
    a, b = tanh(z[:, :H]), sigmoid(z[:, H:])    (activation dtype)
    out  = sum((a*b) * wc_row, axis=-1) + bc    stored as a (1, TM) lane row
    """
    h = wc_ref.shape[1]
    act_dtype = wc_ref.dtype   # bf16 on v6e/v7x, f32 on v5e (set by the wrapper)

    x = x_ref[...].astype(wab_ref.dtype)                        # in-kernel bf16 cast
    z = jnp.dot(x, wab_ref[...],
                preferred_element_type=jnp.float32)             # (TM, 2H) f32 (MXU)
    z = (z + bab_ref[...]).astype(act_dtype)                    # f32 bias add

    a = jnp.tanh(z[:, :h])                                      # EUP tanh
    # sigmoid(t) == 0.5 * (tanh(0.5*t) + 1): one EUP op, no exp + recip.
    b = 0.5 * (jnp.tanh(0.5 * z[:, h:]) + 1.0)
    gated = a * b                                               # (TM, H)  VPU

    # attention_c: Linear(H, 1) as multiply + lane reduction (XLU).
    # TODO(synk): on v6e/v7x this reduce could move onto the MXU (wc padded to
    # (H, 128)) if profiling shows the XLU on the critical path.
    out = jnp.sum(gated * wc_ref[...], axis=-1)                 # (TM,)
    out = out.astype(jnp.float32) + bc_ref[0]                   # final add in f32
    # Lane-dense store: per-row results laid out as a (1, TM) lane row.
    a_out_ref[...] = out.reshape(1, 1, out.shape[0]).astype(a_out_ref.dtype)


def gated_attention_network(x, params, *, tm_cap=None, act_dtype=None,
                            matmul_dtype=jnp.bfloat16):
    """Pallas implementation of GatedAttentionNetwork.forward (eval mode).

    Args:
      x: (N_TILES, EMBD_DIM) array (any float dtype; cast to bf16 in-kernel).
      params: dict with wa (D,H), ba (1,H), wb (D,H), bb (1,H), wc (H,1), bc (1,1).
      tm_cap: optional max rows per grid step (default: per-generation).
      act_dtype: optional activation dtype (default: bf16 on v6e/v7x, f32 on v5e).
      matmul_dtype: MXU operand dtype (bf16; accumulation is always f32).
    Returns:
      (a, x) with a of shape (N_TILES, 1), x unchanged.
    """
    n, d = x.shape
    h = params["wa"].shape[1]
    gen = _tpu_generation()

    if act_dtype is None:
        # v5e has no bf16 VPU/EUP path -> keep activations f32 there.
        act_dtype = jnp.float32 if gen <= 5 else jnp.bfloat16
    if gen >= 7:
        vmem_cap = 56 * 1024 * 1024      # 64 MiB physical per TC, leave headroom
        default_tm_cap = 1024
    else:
        vmem_cap = 100 * 1024 * 1024     # 128 MiB physical on v5e/v6e
        default_tm_cap = 2048
    if tm_cap is None:
        tm_cap = default_tm_cap

    # Pad gat_hidden to a lane-tile multiple so z[:, :H] / z[:, H:] stay aligned;
    # padded lanes have zero weights/bias/wc so they contribute exactly 0.
    h_pad = _round_up(h, 128)

    def _pad_h(w):
        return w if h_pad == h else jnp.pad(w, ((0, 0), (0, h_pad - h)))

    w_ab = jnp.concatenate([_pad_h(params["wa"]), _pad_h(params["wb"])],
                           axis=1).astype(matmul_dtype)            # (D, 2*Hp)
    b_ab = jnp.concatenate([_pad_h(params["ba"]), _pad_h(params["bb"])],
                           axis=1).astype(jnp.float32)             # (1, 2*Hp)
    wc_row = _pad_h(params["wc"].reshape(1, h)).astype(act_dtype)  # (1, Hp)
    bc = params["bc"].reshape(1).astype(jnp.float32)               # (1,) SMEM scalar

    # Row tile: multiple of 128, as large as the VMEM budget allows.  Pallas
    # clips the last (partial) block itself -- no wrapper-side pad of x.
    tm = max(128, min(_round_up(tm_cap, 128), _round_up(n, 128)))
    if gen >= 7 and n > 128:
        # >= 2 grid steps so the "parallel" axis spans both v7x TensorCores.
        tm = min(tm, _round_up(pl.cdiv(n, 2), 128))
    x_isz = x.dtype.itemsize
    act_isz = jnp.dtype(act_dtype).itemsize
    while tm > 128 and 2 * _vmem_estimate(tm, d, h_pad, x_isz, act_isz) > vmem_cap:
        tm = max(128, _round_up(tm // 2, 128))

    n_blocks = pl.cdiv(n, tm)
    n_pad = n_blocks * tm
    vmem_limit = int(min(vmem_cap,
                         max(32 * 1024 * 1024,
                             2 * _vmem_estimate(tm, d, h_pad, x_isz, act_isz))))

    cost = pl.CostEstimate(
        flops=4 * n_pad * d * h_pad + 4 * n_pad * h_pad,
        transcendentals=2 * n_pad * h_pad,
        bytes_accessed=(n * d * x_isz + w_ab.size * 2 + b_ab.size * 4
                        + wc_row.size * act_isz + 4 + n_pad * 4),
    )

    def _call(const_mode):
        def _const_spec(shape):
            if const_mode is None:
                return pl.BlockSpec(shape, lambda i: (0,) * len(shape))
            return pl.BlockSpec(shape, lambda i: (0,) * len(shape),
                                pipeline_mode=const_mode)

        return pl.pallas_call(
            gated_attention_kernel,
            out_shape=jax.ShapeDtypeStruct((n_blocks, 1, tm), x.dtype),
            grid_spec=pltpu.PrefetchScalarGridSpec(
                num_scalar_prefetch=0,
                grid=(n_blocks,),
                in_specs=[
                    pl.BlockSpec((tm, d), lambda i: (i, 0)),            # x row tile
                    _const_spec((d, 2 * h_pad)),                        # [Wa | Wb]
                    _const_spec((1, 2 * h_pad)),                        # [ba | bb]
                    _const_spec((1, h_pad)),                            # wc lane row
                    pl.BlockSpec(memory_space=pltpu.MemorySpace.SMEM),  # bc scalar
                ],
                out_specs=pl.BlockSpec((1, 1, tm), lambda i: (i, 0, 0)),
            ),
            compiler_params=pltpu.CompilerParams(
                dimension_semantics=("parallel",),   # row tiles shard across TCs
                vmem_limit_bytes=vmem_limit,
            ),
            cost_estimate=cost,
        )(x, w_ab, b_ab, wc_row, bc)

    try:
        # Constant-index blocks only need a single VMEM buffer.
        const_mode = pl.Buffered(1) if hasattr(pl, "Buffered") else None
        a_blocks = _call(const_mode)
    except Exception:
        # Runtime without single-buffered-input support: fall back to defaults.
        a_blocks = _call(None)

    a = a_blocks.reshape(n_pad)[:n].reshape(n, 1)
    # Module returns (attention logits, unchanged input features).
    return a, x


def init_params(key, in_features, gat_hidden):
    """Deterministic init mimicking nn.Linear shapes (stored transposed, (in, out))."""
    k = jax.random.split(key, 6)
    bound_a = 1.0 / jnp.sqrt(in_features)
    bound_c = 1.0 / jnp.sqrt(gat_hidden)
    wa = jax.random.uniform(k[0], (in_features, gat_hidden), jnp.float32,
                            -bound_a, bound_a)
    ba = jax.random.uniform(k[1], (1, gat_hidden), jnp.float32, -bound_a, bound_a)
    wb = jax.random.uniform(k[2], (in_features, gat_hidden), jnp.float32,
                            -bound_a, bound_a)
    bb = jax.random.uniform(k[3], (1, gat_hidden), jnp.float32, -bound_a, bound_a)
    wc = jax.random.uniform(k[4], (gat_hidden, 1), jnp.float32, -bound_c, bound_c)
    bc = jax.random.uniform(k[5], (1, 1), jnp.float32, -bound_c, bound_c)
    return dict(wa=wa, ba=ba, wb=wb, bb=bb, wc=wc, bc=bc)


def reference_forward(x, params):
    """Plain-JAX reference of the PyTorch forward (eval mode; dropout = identity)."""
    a = jnp.tanh(x @ params["wa"] + params["ba"])
    b = jax.nn.sigmoid(x @ params["wb"] + params["bb"])
    out = (a * b) @ params["wc"] + params["bc"]
    return out, x


if __name__ == "__main__":
    # Small shapes consistent with (N_TILES, EMBD_DIM) -> hidden -> 1.
    N_TILES = 200       # not a tile multiple -> exercises the clipped last block
    EMBD_DIM = 128      # in_features (small stand-in for 1024)
    GAT_HIDDEN = 96     # gat_hidden (not a lane multiple -> exercises H padding)

    key = jax.random.PRNGKey(0)
    kx, kp = jax.random.split(key)
    x = jax.random.normal(kx, (N_TILES, EMBD_DIM), jnp.float32)
    params = init_params(kp, EMBD_DIM, GAT_HIDDEN)

    # tm_cap=128 so this small test runs a multi-step "parallel" grid with a
    # partial last block; production use keeps the per-generation defaults.
    a, x_out = gated_attention_network(x, params, tm_cap=128)
    a = jax.block_until_ready(a)
    x_out = jax.block_until_ready(x_out)

    a_ref, _ = reference_forward(x, params)
    assert a.shape == (N_TILES, 1), a.shape
    assert x_out.shape == (N_TILES, EMBD_DIM)
    max_err = float(jnp.max(jnp.abs(a - a_ref)))
    # bf16 MXU operands (+ bf16 activations on v6e/v7x) -> loose tolerance.
    assert jnp.allclose(a, a_ref, atol=5e-2, rtol=5e-2), f"max_err={max_err}"
    assert jnp.array_equal(x_out, x)

    print("KERNEL_OK")
</pallas_src>

<mosaic_0001>
module attributes {stable_mosaic.version = 11 : i64} {
  func.func @gated_attention_kernel(%arg0: i32, %arg1: memref<128x128xf32, #tpu.memory_space<vmem>>, %arg2: memref<128x256xbf16, #tpu.memory_space<vmem>>, %arg3: memref<1x256xf32, #tpu.memory_space<vmem>>, %arg4: memref<1x128xbf16, #tpu.memory_space<vmem>>, %arg5: memref<1xf32, #tpu.memory_space<smem>>, %arg6: memref<1x1x128xf32, #tpu.memory_space<vmem>>) attributes {dimension_semantics = [#tpu.dimension_semantics<parallel>], iteration_bounds = array<i64: 2>, scalar_prefetch = 0 : i64, scratch_operands = 0 : i64, tpu.core_type = #tpu.core_type<tc>, window_params = [{transform_indices = @transform_0, window_bounds = array<i64: 128, 128>}, {pipeline_mode = #tpu.pipeline_mode<synchronous>, transform_indices = @transform_1, window_bounds = array<i64: 128, 256>}, {pipeline_mode = #tpu.pipeline_mode<synchronous>, transform_indices = @transform_2, window_bounds = array<i64: 1, 256>}, {pipeline_mode = #tpu.pipeline_mode<synchronous>, transform_indices = @transform_3, window_bounds = array<i64: 1, 128>}, {transform_indices = @transform_4, window_bounds = array<i64: 1>}, {transform_indices = @transform_5, window_bounds = array<i64: 1, 1, 128>}]} {
    %c0 = arith.constant 0 : index
    %c0_0 = arith.constant 0 : index
    %0 = vector.load %arg1[%c0, %c0_0] : memref<128x128xf32, #tpu.memory_space<vmem>>, vector<128x128xf32>
    %1 = arith.truncf %0 : vector<128x128xf32> to vector<128x128xbf16>
    %c0_1 = arith.constant 0 : index
    %c0_2 = arith.constant 0 : index
    %2 = vector.load %arg2[%c0_1, %c0_2] : memref<128x256xbf16, #tpu.memory_space<vmem>>, vector<128x256xbf16>
    %cst = arith.constant dense<0.000000e+00> : vector<128x256xf32>
    %3 = tpu.matmul %1, %2, %cst {dimension_numbers = #tpu.dot_dimension_numbers<[1], [0], [0], [1], [0, 0, 1, 1], [], []>} : vector<128x128xbf16>, vector<128x256xbf16>, vector<128x256xf32> -> vector<128x256xf32>
    %c0_3 = arith.constant 0 : index
    %c0_4 = arith.constant 0 : index
    %4 = vector.load %arg3[%c0_3, %c0_4] : memref<1x256xf32, #tpu.memory_space<vmem>>, vector<1x256xf32>
    %5 = vector.broadcast %4 : vector<1x256xf32> to vector<128x256xf32>
    %6 = arith.addf %3, %5 : vector<128x256xf32>
    %7 = arith.truncf %6 : vector<128x256xf32> to vector<128x256xbf16>
    %8 = vector.extract_strided_slice %7 {offsets = [0, 0], sizes = [128, 128], strides = [1, 1]} : vector<128x256xbf16> to vector<128x128xbf16>
    %9 = math.tanh %8 : vector<128x128xbf16>
    %10 = vector.extract_strided_slice %7 {offsets = [0, 128], sizes = [128, 128], strides = [1, 1]} : vector<128x256xbf16> to vector<128x128xbf16>
    %cst_5 = arith.constant 5.000000e-01 : bf16
    %11 = vector.broadcast %cst_5 : bf16 to vector<128x128xbf16>
    %12 = arith.mulf %11, %10 : vector<128x128xbf16>
    %13 = math.tanh %12 : vector<128x128xbf16>
    %cst_6 = arith.constant 1.000000e+00 : bf16
    %14 = vector.broadcast %cst_6 : bf16 to vector<128x128xbf16>
    %15 = arith.addf %13, %14 : vector<128x128xbf16>
    %cst_7 = arith.constant 5.000000e-01 : bf16
    %16 = vector.broadcast %cst_7 : bf16 to vector<128x128xbf16>
    %17 = arith.mulf %16, %15 : vector<128x128xbf16>
    %18 = arith.mulf %9, %17 : vector<128x128xbf16>
    %c0_8 = arith.constant 0 : index
    %c0_9 = arith.constant 0 : index
    %19 = vector.load %arg4[%c0_8, %c0_9] : memref<1x128xbf16, #tpu.memory_space<vmem>>, vector<1x128xbf16>
    %20 = vector.broadcast %19 : vector<1x128xbf16> to vector<128x128xbf16>
    %21 = arith.mulf %18, %20 : vector<128x128xbf16>
    %22 = arith.extf %21 : vector<128x128xbf16> to vector<128x128xf32>
    %cst_10 = arith.constant dense<0.000000e+00> : vector<128xf32>
    %23 = vector.multi_reduction <add>, %22, %cst_10 [1] : vector<128x128xf32> to vector<128xf32>
    %24 = arith.truncf %23 : vector<128xf32> to vector<128xbf16>
    %25 = arith.extf %24 : vector<128xbf16> to vector<128xf32>
    %c0_11 = arith.constant 0 : index
    %26 = memref.load %arg5[%c0_11] : memref<1xf32, #tpu.memory_space<smem>>
    %27 = vector.broadcast %26 : f32 to vector<128xf32>
    %28 = arith.addf %25, %27 : vector<128xf32>
    %29 = vector.shape_cast %28 : vector<128xf32> to vector<1x1x128xf32>
    %c0_12 = arith.constant 0 : index
    %c0_13 = arith.constant 0 : index
    %c0_14 = arith.constant 0 : index
    %30 = vector.load %arg6[%c0_12, %c0_13, %c0_14] : memref<1x1x128xf32, #tpu.memory_space<vmem>>, vector<1x1x128xf32>
    tpu.vector_store %arg6[%c0_12, %c0_13, %c0_14], %29 {strides = array<i32>} : memref<1x1x128xf32, #tpu.memory_space<vmem>>, vector<1x1x128xf32>,
    return
  }
  func.func @transform_0(%arg0: i32) -> (i32, i32) {
    %c0_i32 = arith.constant 0 : i32
    %c0_i32_0 = arith.constant 0 : i32
    return %arg0, %c0_i32 : i32, i32
  }
  func.func @transform_1(%arg0: i32) -> (i32, i32) {
    %c0_i32 = arith.constant 0 : i32
    %c0_i32_0 = arith.constant 0 : i32
    %c0_i32_1 = arith.constant 0 : i32
    return %c0_i32, %c0_i32_0 : i32, i32
  }
  func.func @transform_2(%arg0: i32) -> (i32, i32) {
    %c0_i32 = arith.constant 0 : i32
    %c0_i32_0 = arith.constant 0 : i32
    %c0_i32_1 = arith.constant 0 : i32
    return %c0_i32, %c0_i32_0 : i32, i32
  }
  func.func @transform_3(%arg0: i32) -> (i32, i32) {
    %c0_i32 = arith.constant 0 : i32
    %c0_i32_0 = arith.constant 0 : i32
    %c0_i32_1 = arith.constant 0 : i32
    return %c0_i32, %c0_i32_0 : i32, i32
  }
  func.func @transform_4(%arg0: i32) -> i32 {
    %c0_i32 = arith.constant 0 : i32
    %c0_i32_0 = arith.constant 0 : i32
    return %c0_i32 : i32
  }
  func.func @transform_5(%arg0: i32) -> (i32, i32, i32) {
    %c0_i32 = arith.constant 0 : i32
    %c0_i32_0 = arith.constant 0 : i32
    %c0_i32_1 = arith.constant 0 : i32
    return %arg0, %c0_i32, %c0_i32_0 : i32, i32, i32
  }
}

module attributes {stable_mosaic.version = 11 : i64} {
  func.func @gated_attention_kernel(%arg0: i32, %arg1: memref<128x128xf32, #tpu.memory_space<vmem>>, %arg2: memref<128x256xbf16, #tpu.memory_space<vmem>>, %arg3: memref<1x256xf32, #tpu.memory_space<vmem>>, %arg4: memref<1x128xbf16, #tpu.memory_space<vmem>>, %arg5: memref<1xf32, #tpu.memory_space<smem>>, %arg6: memref<1x1x128xf32, #tpu.memory_space<vmem>>) attributes {dimension_semantics = [#tpu.dimension_semantics<parallel>], iteration_bounds = array<i64: 2>, scalar_prefetch = 0 : i64, scratch_operands = 0 : i64, tpu.core_type = #tpu.core_type<tc>, window_params = [{transform_indices = @transform_0, window_bounds = array<i64: 128, 128>}, {pipeline_mode = #tpu.pipeline_mode<synchronous>, transform_indices = @transform_1, window_bounds = array<i64: 128, 256>}, {pipeline_mode = #tpu.pipeline_mode<synchronous>, transform_indices = @transform_2, window_bounds = array<i64: 1, 256>}, {pipeline_mode = #tpu.pipeline_mode<synchronous>, transform_indices = @transform_3, window_bounds = array<i64: 1, 128>}, {transform_indices = @transform_4, window_bounds = array<i64: 1>}, {transform_indices = @transform_5, window_bounds = array<i64: 1, 1, 128>}]} {
    %c0 = arith.constant 0 : index
    %c0_0 = arith.constant 0 : index
    %0 = vector.load %arg1[%c0, %c0_0] : memref<128x128xf32, #tpu.memory_space<vmem>>, vector<128x128xf32>
    %1 = arith.truncf %0 : vector<128x128xf32> to vector<128x128xbf16>
    %c0_1 = arith.constant 0 : index
    %c0_2 = arith.constant 0 : index
    %2 = vector.load %arg2[%c0_1, %c0_2] : memref<128x256xbf16, #tpu.memory_space<vmem>>, vector<128x256xbf16>
    %cst = arith.constant dense<0.000000e+00> : vector<128x256xf32>
    %3 = tpu.matmul %1, %2, %cst {dimension_numbers = #tpu.dot_dimension_numbers<[1], [0], [0], [1], [0, 0, 1, 1], [], []>} : vector<128x128xbf16>, vector<128x256xbf16>, vector<128x256xf32> -> vector<128x256xf32>
    %c0_3 = arith.constant 0 : index
    %c0_4 = arith.constant 0 : index
    %4 = vector.load %arg3[%c0_3, %c0_4] : memref<1x256xf32, #tpu.memory_space<vmem>>, vector<1x256xf32>
    %5 = vector.broadcast %4 : vector<1x256xf32> to vector<128x256xf32>
    %6 = arith.addf %3, %5 : vector<128x256xf32>
    %7 = arith.truncf %6 : vector<128x256xf32> to vector<128x256xbf16>
    %8 = vector.extract_strided_slice %7 {offsets = [0, 0], sizes = [128, 128], strides = [1, 1]} : vector<128x256xbf16> to vector<128x128xbf16>
    %9 = math.tanh %8 : vector<128x128xbf16>
    %10 = vector.extract_strided_slice %7 {offsets = [0, 128], sizes = [128, 128], strides = [1, 1]} : vector<128x256xbf16> to vector<128x128xbf16>
    %cst_5 = arith.constant 5.000000e-01 : bf16
    %11 = vector.broadcast %cst_5 : bf16 to vector<128x128xbf16>
    %12 = arith.mulf %11, %10 : vector<128x128xbf16>
    %13 = math.tanh %12 : vector<128x128xbf16>
    %cst_6 = arith.constant 1.000000e+00 : bf16
    %14 = vector.broadcast %cst_6 : bf16 to vector<128x128xbf16>
    %15 = arith.addf %13, %14 : vector<128x128xbf16>
    %cst_7 = arith.constant 5.000000e-01 : bf16
    %16 = vector.broadcast %cst_7 : bf16 to vector<128x128xbf16>
    %17 = arith.mulf %16, %15 : vector<128x128xbf16>
    %18 = arith.mulf %9, %17 : vector<128x128xbf16>
    %c0_8 = arith.constant 0 : index
    %c0_9 = arith.constant 0 : index
    %19 = vector.load %arg4[%c0_8, %c0_9] : memref<1x128xbf16, #tpu.memory_space<vmem>>, vector<1x128xbf16>
    %20 = vector.broadcast %19 : vector<1x128xbf16> to vector<128x128xbf16>
    %21 = arith.mulf %18, %20 : vector<128x128xbf16>
    %22 = arith.extf %21 : vector<128x128xbf16> to vector<128x128xf32>
    %cst_10 = arith.constant dense<0.000000e+00> : vector<128xf32>
    %23 = vector.multi_reduction <add>, %22, %cst_10 [1] : vector<128x128xf32> to vector<128xf32>
    %24 = arith.truncf %23 : vector<128xf32> to vector<128xbf16>
    %25 = arith.extf %24 : vector<128xbf16> to vector<128xf32>
    %c0_11 = arith.constant 0 : index
    %26 = memref.load %arg5[%c0_11] : memref<1xf32, #tpu.memory_space<smem>>
    %27 = vector.broadcast %26 : f32 to vector<128xf32>
    %28 = arith.addf %25, %27 : vector<128xf32>
    %29 = vector.shape_cast %28 : vector<128xf32> to vector<1x1x128xf32>
    %c0_12 = arith.constant 0 : index
    %c0_13 = arith.constant 0 : index
    %c0_14 = arith.constant 0 : index
    %30 = vector.load %arg6[%c0_12, %c0_13, %c0_14] : memref<1x1x128xf32, #tpu.memory_space<vmem>>, vector<1x1x128xf32>
    tpu.vector_store %arg6[%c0_12, %c0_13, %c0_14], %29 {strides = array<i32>} : memref<1x1x128xf32, #tpu.memory_space<vmem>>, vector<1x1x128xf32>,
    return
  }
  func.func @transform_0(%arg0: i32) -> (i32, i32) {
    %c0_i32 = arith.constant 0 : i32
    %c0_i32_0 = arith.constant 0 : i32
    return %arg0, %c0_i32 : i32, i32
  }
  func.func @transform_1(%arg0: i32) -> (i32, i32) {
    %c0_i32 = arith.constant 0 : i32
    %c0_i32_0 = arith.constant 0 : i32
    %c0_i32_1 = arith.constant 0 : i32
    return %c0_i32, %c0_i32_0 : i32, i32
  }
  func.func @transform_2(%arg0: i32) -> (i32, i32) {
    %c0_i32 = arith.constant 0 : i32
    %c0_i32_0 = arith.constant 0 : i32
    %c0_i32_1 = arith.constant 0 : i32
    return %c0_i32, %c0_i32_0 : i32, i32
  }
  func.func @transform_3(%arg0: i32) -> (i32, i32) {
    %c0_i32 = arith.constant 0 : i32
    %c0_i32_0 = arith.constant 0 : i32
    %c0_i32_1 = arith.constant 0 : i32
    return %c0_i32, %c0_i32_0 : i32, i32
  }
  func.func @transform_4(%arg0: i32) -> i32 {
    %c0_i32 = arith.constant 0 : i32
    %c0_i32_0 = arith.constant 0 : i32
    return %c0_i32 : i32
  }
  func.func @transform_5(%arg0: i32) -> (i32, i32, i32) {
    %c0_i32 = arith.constant 0 : i32
    %c0_i32_0 = arith.constant 0 : i32
    %c0_i32_1 = arith.constant 0 : i32
    return %arg0, %c0_i32, %c0_i32_0 : i32, i32, i32
  }
}

</mosaic_0001>

<llo_original>
// kernel: tpu_custom_call.1
$region0: #{tpu_custom_call.1}
  #allocation0 [shape = 'u32[]', space=smem, size = 0x4, offset = 0x4, fixed_abs, tag = 'smem constant byte address 0x4 - core index']
  #allocation1 [shape = 'u32[144,128]{1,0:T(1,128)}', space=vmem, size = 0x12000, scoped, tag = 'internal scratch']
  #allocation2 [shape = 'f32[1]{0:T(128)S(6)}', space=smem, size = 0x200, scoped, tag = 'scoped memory for tpu_custom_call.1']
  %s0 = inlined_call_operand.hbm [shape: f32[200,128], index: 0, kind: input, shape index: {}]
  %s1 = inlined_call_operand.hbm [shape: bf16[128,256], index: 1, kind: input, shape index: {}]
  %s2 = inlined_call_operand.vmem [shape: f32[1,256], index: 2, kind: input, shape index: {}]
  %s3 = inlined_call_operand.vmem [shape: bf16[1,128], index: 3, kind: input, shape index: {}]
  %s4 = inlined_call_operand.<no memory space> [shape: f32[1], index: 4, kind: input, shape index: {}]
  %s5 = inlined_call_operand.hbm [shape: f32[2,1,128], index: 5, kind: output, shape index: {}]
  %s6 = sld [smem:[#allocation0]]
  $region61: #{tpu_custom_call.1} parent=0
    _
  %s8 = ssub.s32 1, %s6
  %s9 = scalar_select 0, %s8, %s6
  %10 = sst [smem:[#allocation2]] %s4
  $region1: #{tpu_custom_call.1} parent=0
    #allocation3 [shape = 'u8[131072]{0}', space=vmem, size = 0x20000, scoped, tag = 'input window, operand 0']
    #allocation4 [shape = 's32[2]{0}', space=sflag, size = 0x8, scoped, tag = 'scoped memory for tpu_custom_call.1']
    #allocation5 [shape = 's32[2]{0}', space=sflag, size = 0x8, scoped, tag = 'scoped memory for tpu_custom_call.1']
    #allocation6 [shape = 'u8[65536]{0}', space=vmem, size = 0x10000, scoped, tag = 'input window, operand 1, single buffered']
    #allocation7 [shape = 's32[1]{0}', space=sflag, size = 0x4, scoped, tag = 'scoped memory for tpu_custom_call.1']
    #allocation8 [shape = 'u8[1024]{0}', space=vmem, size = 0x400, scoped, tag = 'output window, operand 0']
    %11 = vsyncpa [#allocation4], 0
    %s12 = scalar_lea.sflag [#allocation4], 1
    %13 = vsyncpa %s12, 0
    %14 = vsyncpa [#allocation7], 0
    %15 = vsyncpa [#allocation5], 0
    %s16 = scalar_lea.sflag [#allocation5], 1
    %17 = vsyncpa %s16, 0
    loop: start=0, step=1, limit=4
    $region2: #{tpu_custom_call.1} parent=1 // loop_pre_header
      _
    $region3: #{tpu_custom_call.1} parent=1 // loop_header
      %s19 = sphi 0, %s23
      %p20 = scmp.ge.s32.totalorder %s19, 4
      %s29 = sphi 0, %s31
      %s32 = sphi 0, %s29
      %s33 = sphi 0, %s32
      %s49 = sphi 0, %s33
      %s53 = sphi 0, %s53
      %s55 = sphi 0, %s53
      %s56 = sphi 0, %s55
      %s70 = sphi 0, %s56
      %s74 = sphi 0, %s74
      %s76 = sphi 0, %s74
      %s77 = sphi 0, %s76
      %s91 = sphi 0, %s77
      %s95 = sphi 0, %s95
      %s97 = sphi 0, %s95
      %s98 = sphi 0, %s97
      %s112 = sphi 0, %s98
      %s116 = sphi 0, %s116
      %s118 = sphi 0, %s116
      %s119 = sphi 0, %s118
      %s133 = sphi 0, %s119
      %s139 = sphi 0, %s141
      %s142 = sphi 0, %s139
      %s143 = sphi 0, %s142
      %s159 = sphi 0, %s143
    $region4: #{tpu_custom_call.1} parent=1 // loop_header_branch
      %22 = sbr.rel (%p20) target = $region8
    $region5: #{tpu_custom_call.1} parent=1 // loop_body
      %s24 = ssub.s32 %s19, 1
      %s25 = ssub.s32 %s19, 2
      %s26 = sadd.s32 %s19, 1
      %s27 = ssub.s32 %s19, %s26
      %p28 = scmp.eq.s32.totalorder %s27, 0
      %s30 = sadd.s32 %s29, 1
      %s31 = scalar_select %p28, %s29, %s30
      %p34 = pneg %p28
      %p35 = scmp.eq.s32.totalorder %s19, 1
      %p36 = por %p34, %p35
      %p37 = scmp.ne.s32.totalorder %s29, %s32
      %p38 = scmp.eq.s32.totalorder %s19, 0
      %p39 = por %p37, %p38
      %p40 = scmp.ne.s32.totalorder %s29, %s32
      %p41 = scmp.eq.s32.totalorder %s24, 1
      %p42 = por %p40, %p41
      %p43 = scmp.ne.s32.totalorder %s32, %s33
      %p44 = scmp.eq.s32.totalorder %s24, 0
      %p45 = por %p43, %p44
      %p46 = scmp.ne.s32.totalorder %s32, %s33
      %p47 = scmp.eq.s32.totalorder %s25, 1
      %p48 = por %p46, %p47
      %p50 = scmp.ne.s32.totalorder %s33, %s49
      %p51 = scmp.eq.s32.totalorder %s25, 0
      %p52 = por %p50, %p51
      %s54 = sadd.s32 %s53, 1
      %p57 = scmp.eq.s32.totalorder %s19, 1
      %p58 = scmp.ne.s32.totalorder %s53, %s55
      %p59 = scmp.eq.s32.totalorder %s19, 0
      %p60 = por %p58, %p59
      %p61 = scmp.ne.s32.totalorder %s53, %s55
      %p62 = scmp.eq.s32.totalorder %s24, 1
      %p63 = por %p61, %p62
      %p64 = scmp.ne.s32.totalorder %s55, %s56
      %p65 = scmp.eq.s32.totalorder %s24, 0
      %p66 = por %p64, %p65
      %p67 = scmp.ne.s32.totalorder %s55, %s56
      %p68 = scmp.eq.s32.totalorder %s25, 1
      %p69 = por %p67, %p68
      %p71 = scmp.ne.s32.totalorder %s56, %s70
      %p72 = scmp.eq.s32.totalorder %s25, 0
      %p73 = por %p71, %p72
      %s75 = sadd.s32 %s74, 1
      %p78 = scmp.eq.s32.totalorder %s19, 1
      %p79 = scmp.ne.s32.totalorder %s74, %s76
      %p80 = scmp.eq.s32.totalorder %s19, 0
      %p81 = por %p79, %p80
      %p82 = scmp.ne.s32.totalorder %s74, %s76
      %p83 = scmp.eq.s32.totalorder %s24, 1
      %p84 = por %p82, %p83
      %p85 = scmp.ne.s32.totalorder %s76, %s77
      %p86 = scmp.eq.s32.totalorder %s24, 0
      %p87 = por %p85, %p86
      %p88 = scmp.ne.s32.totalorder %s76, %s77
      %p89 = scmp.eq.s32.totalorder %s25, 1
      %p90 = por %p88, %p89
      %p92 = scmp.ne.s32.totalorder %s77, %s91
      %p93 = scmp.eq.s32.totalorder %s25, 0
      %p94 = por %p92, %p93
      %s96 = sadd.s32 %s95, 1
      %p99 = scmp.eq.s32.totalorder %s19, 1
      %p100 = scmp.ne.s32.totalorder %s95, %s97
      %p101 = scmp.eq.s32.totalorder %s19, 0
      %p102 = por %p100, %p101
      %p103 = scmp.ne.s32.totalorder %s95, %s97
      %p104 = scmp.eq.s32.totalorder %s24, 1
      %p105 = por %p103, %p104
      %p106 = scmp.ne.s32.totalorder %s97, %s98
      %p107 = scmp.eq.s32.totalorder %s24, 0
      %p108 = por %p106, %p107
      %p109 = scmp.ne.s32.totalorder %s97, %s98
      %p110 = scmp.eq.s32.totalorder %s25, 1
      %p111 = por %p109, %p110
      %p113 = scmp.ne.s32.totalorder %s98, %s112
      %p114 = scmp.eq.s32.totalorder %s25, 0
      %p115 = por %p113, %p114
      %s117 = sadd.s32 %s116, 1
      %p120 = scmp.eq.s32.totalorder %s19, 1
      %p121 = scmp.ne.s32.totalorder %s116, %s118
      %p122 = scmp.eq.s32.totalorder %s19, 0
      %p123 = por %p121, %p122
      %p124 = scmp.ne.s32.totalorder %s116, %s118
      %p125 = scmp.eq.s32.totalorder %s24, 1
      %p126 = por %p124, %p125
      %p127 = scmp.ne.s32.totalorder %s118, %s119
      %p128 = scmp.eq.s32.totalorder %s24, 0
      %p129 = por %p127, %p128
      %p130 = scmp.ne.s32.totalorder %s118, %s119
      %p131 = scmp.eq.s32.totalorder %s25, 1
      %p132 = por %p130, %p131
      %p134 = scmp.ne.s32.totalorder %s119, %s133
      %p135 = scmp.eq.s32.totalorder %s25, 0
      %p136 = por %p134, %p135
      %s137 = ssub.s32 %s19, %s26
      %p138 = scmp.eq.s32.totalorder %s137, 0
      %s140 = sadd.s32 %s139, 1
      %s141 = scalar_select %p138, %s139, %s140
      %p144 = pneg %p138
      %p145 = scmp.eq.s32.totalorder %s19, 1
      %p146 = por %p144, %p145
      %p147 = scmp.ne.s32.totalorder %s139, %s142
      %p148 = scmp.eq.s32.totalorder %s19, 0
      %p149 = por %p147, %p148
      %p150 = scmp.ne.s32.totalorder %s139, %s142
      %p151 = scmp.eq.s32.totalorder %s24, 1
      %p152 = por %p150, %p151
      %p153 = scmp.ne.s32.totalorder %s142, %s143
      %p154 = scmp.eq.s32.totalorder %s24, 0
      %p155 = por %p153, %p154
      %p156 = scmp.ne.s32.totalorder %s142, %s143
      %p157 = scmp.eq.s32.totalorder %s25, 1
      %p158 = por %p156, %p157
      %p160 = scmp.ne.s32.totalorder %s143, %s159
      %p161 = scmp.eq.s32.totalorder %s25, 0
      %p162 = por %p160, %p161
      %p163 = scmp.le.s32.totalorder 1, %s19
      %p164 = scmp.lt.s32.totalorder %s19, 3
      %p165 = pnand %p163, %p164
      %p166 = pneg %p165
      // Predicated region
      $region9: #{tpu_custom_call.1} parent=5 // pred_check
        _
      $region10: #{tpu_custom_call.1} parent=5 // pred_check_branch
        %168 = sbr.rel (%p165) target = $region12
      $region11: #{tpu_custom_call.1} parent=5 // pred_region
        %s169 = ssub.s32 %s19, 1
        // Predicated region
        $region13: #{tpu_custom_call.1} parent=11 // pred_check
          %p170 = pneg %p66
        $region14: #{tpu_custom_call.1} parent=11 // pred_check_branch
          %172 = sbr.rel (%p170) target = $region16
        $region15: #{tpu_custom_call.1} parent=11 // pred_region
          %s174 = ssub.s32 2048, 2048
          %175 = vsyncadd [#allocation7], %s174
          %s176 = sshll.u32 [#allocation6], 4
          %s177 = int_to_ptr.vmem [resolvable:$true] %s176
          %182 = dma.hbm_to_vmem [thread:$0]  %s1, 2048, %s177, [#allocation7], 128, 128, 8
        $region16: #{tpu_custom_call.1} parent=11 // pred_fallthru
          _
        // Predicated region
        $region17: #{tpu_custom_call.1} parent=11 // pred_check
          %p183 = pneg %p87
        $region18: #{tpu_custom_call.1} parent=11 // pred_check_branch
          %185 = sbr.rel (%p183) target = $region20
        $region19: #{tpu_custom_call.1} parent=11 // pred_region
          _
        $region20: #{tpu_custom_call.1} parent=11 // pred_fallthru
          _
        // Predicated region
        $region21: #{tpu_custom_call.1} parent=11 // pred_check
          %p186 = pneg %p108
        $region22: #{tpu_custom_call.1} parent=11 // pred_check_branch
          %188 = sbr.rel (%p186) target = $region24
        $region23: #{tpu_custom_call.1} parent=11 // pred_region
          _
        $region24: #{tpu_custom_call.1} parent=11 // pred_fallthru
          _
        // Predicated region
        $region25: #{tpu_custom_call.1} parent=11 // pred_check
          %p189 = pneg %p129
        $region26: #{tpu_custom_call.1} parent=11 // pred_check_branch
          %191 = sbr.rel (%p189) target = $region28
        $region27: #{tpu_custom_call.1} parent=11 // pred_region
          _
        $region28: #{tpu_custom_call.1} parent=11 // pred_fallthru
          _
      $region12: #{tpu_custom_call.1} parent=5 // pred_fallthru
        _
      %p192 = scmp.lt.s32.totalorder %s19, 2
      // Predicated region
      $region29: #{tpu_custom_call.1} parent=5 // pred_check
        %p193 = pneg %p192
      $region30: #{tpu_custom_call.1} parent=5 // pred_check_branch
        %195 = sbr.rel (%p193) target = $region32
      $region31: #{tpu_custom_call.1} parent=5 // pred_region
        // Predicated region
        $region33: #{tpu_custom_call.1} parent=31 // pred_check
          %p196 = pneg %p39
        $region34: #{tpu_custom_call.1} parent=31 // pred_check_branch
          %198 = sbr.rel (%p196) target = $region36
        $region35: #{tpu_custom_call.1} parent=31 // pred_region
          %s199 = sand.u32 %s29, 1
          %s200 = scalar_lea.sflag [#allocation4], %s199
          %s201 = sand.u32 %s29, 1
          %s202 = smul.addr %s201, 128
          %s203 = scalar_lea.vmem [#allocation3], %s202
          %s204 = smul.u32 16, %s19
          %s205 = ssub.s32 25, %s204
          %p206 = scmp.lt.s32.totalorder %s205, 16
          %s207 = scalar_select %p206, %s205, 16
          %s208 = smul.u32 128, %s207
          %s210 = ssub.s32 2048, %s208
          %211 = vsyncadd %s200, %s210
          %p212 = scmp.ne.s32.totalorder 0, %s208
          %s213 = smul.addr %s204, 128
          %s214 = scalar_lea.hbm %s0, %s213
          %s215 = smul.u32 8, %s207
          %s216 = sshll.u32 %s203, 4
          %s217 = int_to_ptr.vmem [resolvable:$true] %s216
          %s218 = sshll.u32 %s215, 4
          %222 = dma.hbm_to_vmem [thread:$0]  (%p212), %s214, %s218, %s217, %s200, 128, 128, 8
        $region36: #{tpu_custom_call.1} parent=31 // pred_fallthru
          _
      $region32: #{tpu_custom_call.1} parent=5 // pred_fallthru
        _
      %p223 = scmp.le.s32.totalorder 1, %s19
      %p224 = scmp.lt.s32.totalorder %s19, 3
      %p225 = pnand %p223, %p224
      %p226 = pneg %p225
      // Predicated region
      $region37: #{tpu_custom_call.1} parent=5 // pred_check
        _
      $region38: #{tpu_custom_call.1} parent=5 // pred_check_branch
        %228 = sbr.rel (%p225) target = $region40
      $region39: #{tpu_custom_call.1} parent=5 // pred_region
        %s229 = ssub.s32 %s19, 1
        %s230 = sand.u32 %s32, 1
        %s231 = scalar_lea.sflag [#allocation4], %s230
        %s232 = sand.u32 %s32, 1
        %s233 = smul.addr %s232, 128
        %s234 = scalar_lea.vmem [#allocation3], %s233
        // Predicated region
        $region41: #{tpu_custom_call.1} parent=39 // pred_check
          %p235 = pneg %p45
        $region42: #{tpu_custom_call.1} parent=39 // pred_check_branch
          %237 = sbr.rel (%p235) target = $region44
        $region43: #{tpu_custom_call.1} parent=39 // pred_region
          %238 = dma.done %s231, 2048
        $region44: #{tpu_custom_call.1} parent=39 // pred_fallthru
          _
        // Predicated region
        $region45: #{tpu_custom_call.1} parent=39 // pred_check
          %p239 = pneg %p66
        $region46: #{tpu_custom_call.1} parent=39 // pred_check_branch
          %241 = sbr.rel (%p239) target = $region48
        $region47: #{tpu_custom_call.1} parent=39 // pred_region
          %242 = dma.done [#allocation7], 2048
        $region48: #{tpu_custom_call.1} parent=39 // pred_fallthru
          _
        %s243 = sand.u32 %s32, 1
        %s244 = scalar_lea.sflag [#allocation4], %s243
        %s245 = sand.u32 %s32, 1
        %s246 = smul.addr %s245, 128
        %s247 = scalar_lea.vmem [#allocation3], %s246
        %p248 = pneg %p45
        %p249 = pneg %p42
        %p250 = pneg %p66
        %p251 = pneg %p63
        %p252 = pneg %p87
        %p253 = pneg %p84
        %p254 = pneg %p108
        %p255 = pneg %p105
        %p256 = pneg %p129
        %p257 = pneg %p126
        %p258 = pneg %p155
        %p259 = pneg %p152
        %s260 = sand.u32 %s142, 1
        %s261 = scalar_lea.sflag [#allocation5], %s260
        %s262 = sand.u32 %s142, 1
        %s263 = scalar_lea.vmem [#allocation8], %s262
        %s264 = smul.u32 16, %s24
        %s265 = ssub.s32 25, %s264
        %p266 = scmp.lt.s32.totalorder %s265, 16
        %s267 = scalar_select %p266, %s265, 16
        %s268 = smul.u32 128, %s267
        %v272 = vld [vmem:[%s234] sm:$0xff]
        %v273 = vld [vmem:[%s234 + $0x8] sm:$0xff]
        %v274 = vld [vmem:[%s234 + $0x10] sm:$0xff]
        %v275 = vld [vmem:[%s234 + $0x18] sm:$0xff]
        %v276 = vld [vmem:[%s234 + $0x20] sm:$0xff]
        %v277 = vld [vmem:[%s234 + $0x28] sm:$0xff]
        %v278 = vld [vmem:[%s234 + $0x30] sm:$0xff]
        %v279 = vld [vmem:[%s234 + $0x38] sm:$0xff]
        %v280 = vld [vmem:[%s234 + $0x40] sm:$0xff]
        %v281 = vld [vmem:[%s234 + $0x48] sm:$0xff]
        %v282 = vld [vmem:[%s234 + $0x50] sm:$0xff]
        %v283 = vld [vmem:[%s234 + $0x58] sm:$0xff]
        %v284 = vld [vmem:[%s234 + $0x60] sm:$0xff]
        %v285 = vld [vmem:[%s234 + $0x68] sm:$0xff]
        %v286 = vld [vmem:[%s234 + $0x70] sm:$0xff]
        %v287 = vld [vmem:[%s234 + $0x78] sm:$0xff]
        %v288 = vpack.c.bf16 %v273, %v272
        %v289 = vpack.c.bf16 %v275, %v274
        %v290 = vpack.c.bf16 %v277, %v276
        %v291 = vpack.c.bf16 %v279, %v278
        %v292 = vpack.c.bf16 %v281, %v280
        %v293 = vpack.c.bf16 %v283, %v282
        %v294 = vpack.c.bf16 %v285, %v284
        %v295 = vpack.c.bf16 %v287, %v286
        %v296 = vld [vmem:[#allocation6] sm:$0xff]
        %v297 = vld [vmem:[#allocation6 + $0x8] sm:$0xff]
        %v298 = vld [vmem:[#allocation6 + $0x10] sm:$0xff]
        %v299 = vld [vmem:[#allocation6 + $0x18] sm:$0xff]
        %v300 = vld [vmem:[#allocation6 + $0x20] sm:$0xff]
        %v301 = vld [vmem:[#allocation6 + $0x28] sm:$0xff]
        %v302 = vld [vmem:[#allocation6 + $0x30] sm:$0xff]
        %v303 = vld [vmem:[#allocation6 + $0x38] sm:$0xff]
        %v304 = vld [vmem:[#allocation6 + $0x40] sm:$0xff]
        %v305 = vld [vmem:[#allocation6 + $0x48] sm:$0xff]
        %v306 = vld [vmem:[#allocation6 + $0x50] sm:$0xff]
        %v307 = vld [vmem:[#allocation6 + $0x58] sm:$0xff]
        %v308 = vld [vmem:[#allocation6 + $0x60] sm:$0xff]
        %v309 = vld [vmem:[#allocation6 + $0x68] sm:$0xff]
        %v310 = vld [vmem:[#allocation6 + $0x70] sm:$0xff]
        %v311 = vld [vmem:[#allocation6 + $0x78] sm:$0xff]
        %v312 = vld [vmem:[%s2] sm:$0x3]
        %v314 = vlaneseq
        %v315 = vshrl.u32 %v314, 7
        %v316 = vsub.s32 0, %v315
        %v317 = vrot.slane %v312, %v316
        %v318 = vlaneseq
        %v319 = vshrl.u32 %v318, 7
        %v320 = vsub.s32 1, %v319
        %v321 = vrot.slane %v312, %v320
        %v340 = vunpack.c.l.b16 %v296
        %v341 = vunpack.c.h.b16 %v296
        %v342 = vunpack.c.l.b16 %v297
        %v343 = vunpack.c.h.b16 %v297
        %v344 = vunpack.c.l.b16 %v298
        %v345 = vunpack.c.h.b16 %v298
        %v346 = vunpack.c.l.b16 %v299
        %v347 = vunpack.c.h.b16 %v299
        %v348 = vunpack.c.l.b16 %v300
        %v349 = vunpack.c.h.b16 %v300
        %v350 = vunpack.c.l.b16 %v301
        %v351 = vunpack.c.h.b16 %v301
        %v352 = vunpack.c.l.b16 %v302
        %v353 = vunpack.c.h.b16 %v302
        %v354 = vunpack.c.l.b16 %v303
        %v355 = vunpack.c.h.b16 %v303
        %v356 = vunpack.c.l.b16 %v304
        %v357 = vunpack.c.h.b16 %v304
        %v358 = vunpack.c.l.b16 %v305
        %v359 = vunpack.c.h.b16 %v305
        %v360 = vunpack.c.l.b16 %v306
        %v361 = vunpack.c.h.b16 %v306
        %v362 = vunpack.c.l.b16 %v307
        %v363 = vunpack.c.h.b16 %v307
        %v364 = vunpack.c.l.b16 %v308
        %v365 = vunpack.c.h.b16 %v308
        %v366 = vunpack.c.l.b16 %v309
        %v367 = vunpack.c.h.b16 %v309
        %v368 = vunpack.c.l.b16 %v310
        %v369 = vunpack.c.h.b16 %v310
        %v370 = vunpack.c.l.b16 %v311
        %v371 = vunpack.c.h.b16 %v311
        %v372 = vpack.c.b16 %v342, %v340
        %v373 = vpack.c.b16 %v343, %v341
        %v374 = vpack.c.b16 %v346, %v344
        %v375 = vpack.c.b16 %v347, %v345
        %v376 = vpack.c.b16 %v350, %v348
        %v377 = vpack.c.b16 %v351, %v349
        %v378 = vpack.c.b16 %v354, %v352
        %v379 = vpack.c.b16 %v355, %v353
        %v380 = vpack.c.b16 %v358, %v356
        %v381 = vpack.c.b16 %v359, %v357
        %v382 = vpack.c.b16 %v362, %v360
        %v383 = vpack.c.b16 %v363, %v361
        %v384 = vpack.c.b16 %v366, %v364
        %v385 = vpack.c.b16 %v367, %v365
        %v386 = vpack.c.b16 %v370, %v368
        %v387 = vpack.c.b16 %v371, %v369
        %404 = vmatprep.subr.bf16.mxu0 %v373
        %405 = vmatpush1.bf16.msra.mxu0 %v372
        %406 = vmatprep.subr.bf16.mxu0 %v375
        %407 = vmatpush1.bf16.msra.mxu0 %v374
        %408 = vmatprep.subr.bf16.mxu0 %v377
        %409 = vmatpush1.bf16.msra.mxu0 %v376
        %410 = vmatprep.subr.bf16.mxu0 %v379
        %411 = vmatpush1.bf16.msra.mxu0 %v378
        %412 = vmatprep.subr.bf16.mxu0 %v381
        %413 = vmatpush1.bf16.msra.mxu0 %v380
        %414 = vmatprep.subr.bf16.mxu0 %v383
        %415 = vmatpush1.bf16.msra.mxu0 %v382
        %416 = vmatprep.subr.bf16.mxu0 %v385
        %417 = vmatpush1.bf16.msra.mxu0 %v384
        %418 = vmatprep.subr.bf16.mxu0 %v387
        %419 = vmatpush1.bf16.msra.mxu0 %v386
        %420 = vmatprep.subr.bf16.mxu0 0
        %421 = vmatpush1.bf16.msra.mxu0 0
        %422 = vmatprep.subr.bf16.mxu0 0
        %423 = vmatpush1.bf16.msra.mxu0 0
        %424 = vmatprep.subr.bf16.mxu0 0
        %425 = vmatpush1.bf16.msra.mxu0 0
        %426 = vmatprep.subr.bf16.mxu0 0
        %427 = vmatpush1.bf16.msra.mxu0 0
        %428 = vmatprep.subr.bf16.mxu0 0
        %429 = vmatpush1.bf16.msra.mxu0 0
        %430 = vmatprep.subr.bf16.mxu0 0
        %431 = vmatpush1.bf16.msra.mxu0 0
        %432 = vmatprep.subr.bf16.mxu0 0
        %433 = vmatpush1.bf16.msra.mxu0 0
        %434 = vmatprep.subr.bf16.mxu0 0
        %435 = vmatpush1.bf16.msra.mxu0 0
        %436 = vmatprep.mubr.bf16.mxu0 0
        %437 = vmatmul.mubr.bf16.gmra.mrb[0].mxu0 %v288
        %v438 = vpop.f32.mrb[0].mxu0
        %v439 = vadd.f32 %v317, %v438
        %v440 = vpop.f32.mrb[0].mxu0
        %v441 = vadd.f32 %v321, %v440
        %v442 = vpop.f32.mrb[0].mxu0
        %v443 = vadd.f32 %v317, %v442
        %v444 = vpop.f32.mrb[0].mxu0
        %v445 = vadd.f32 %v321, %v444
        %446 = vmatprep.mubr.bf16.mxu0 0
        %447 = vmatmul.mubr.bf16.gmra.mrb[0].mxu0 %v289
        %v448 = vpop.f32.mrb[0].mxu0
        %v449 = vadd.f32 %v317, %v448
        %v450 = vpop.f32.mrb[0].mxu0
        %v451 = vadd.f32 %v321, %v450
        %v452 = vpop.f32.mrb[0].mxu0
        %v453 = vadd.f32 %v317, %v452
        %v454 = vpop.f32.mrb[0].mxu0
        %v455 = vadd.f32 %v321, %v454
        %456 = vmatprep.mubr.bf16.mxu0 0
        %457 = vmatmul.mubr.bf16.gmra.mrb[0].mxu0 %v290
        %v458 = vpop.f32.mrb[0].mxu0
        %v459 = vadd.f32 %v317, %v458
        %v460 = vpop.f32.mrb[0].mxu0
        %v461 = vadd.f32 %v321, %v460
        %v462 = vpop.f32.mrb[0].mxu0
        %v463 = vadd.f32 %v317, %v462
        %v464 = vpop.f32.mrb[0].mxu0
        %v465 = vadd.f32 %v321, %v464
        %466 = vmatprep.mubr.bf16.mxu0 0
        %467 = vmatmul.mubr.bf16.gmra.mrb[0].mxu0 %v291
        %v468 = vpop.f32.mrb[0].mxu0
        %v469 = vadd.f32 %v317, %v468
        %v470 = vpop.f32.mrb[0].mxu0
        %v471 = vadd.f32 %v321, %v470
        %v472 = vpop.f32.mrb[0].mxu0
        %v473 = vadd.f32 %v317, %v472
        %v474 = vpop.f32.mrb[0].mxu0
        %v475 = vadd.f32 %v321, %v474
        %476 = vmatprep.mubr.bf16.mxu0 0
        %477 = vmatmul.mubr.bf16.gmra.mrb[0].mxu0 %v292
        %v478 = vpop.f32.mrb[0].mxu0
        %v479 = vadd.f32 %v317, %v478
        %v480 = vpop.f32.mrb[0].mxu0
        %v481 = vadd.f32 %v321, %v480
        %v482 = vpop.f32.mrb[0].mxu0
        %v483 = vadd.f32 %v317, %v482
        %v484 = vpop.f32.mrb[0].mxu0
        %v485 = vadd.f32 %v321, %v484
        %486 = vmatprep.mubr.bf16.mxu0 0
        %487 = vmatmul.mubr.bf16.gmra.mrb[0].mxu0 %v293
        %v488 = vpop.f32.mrb[0].mxu0
        %v489 = vadd.f32 %v317, %v488
        %v490 = vpop.f32.mrb[0].mxu0
        %v491 = vadd.f32 %v321, %v490
        %v492 = vpop.f32.mrb[0].mxu0
        %v493 = vadd.f32 %v317, %v492
        %v494 = vpop.f32.mrb[0].mxu0
        %v495 = vadd.f32 %v321, %v494
        %496 = vmatprep.mubr.bf16.mxu0 0
        %497 = vmatmul.mubr.bf16.gmra.mrb[0].mxu0 %v294
        %v498 = vpop.f32.mrb[0].mxu0
        %v499 = vadd.f32 %v317, %v498
        %v500 = vpop.f32.mrb[0].mxu0
        %v501 = vadd.f32 %v321, %v500
        %v502 = vpop.f32.mrb[0].mxu0
        %v503 = vadd.f32 %v317, %v502
        %v504 = vpop.f32.mrb[0].mxu0
        %v505 = vadd.f32 %v321, %v504
        %506 = vmatprep.mubr.bf16.mxu0 0
        %507 = vmatmul.mubr.bf16.gmra.mrb[0].mxu0 %v295
        %v508 = vpop.f32.mrb[0].mxu0
        %v509 = vadd.f32 %v317, %v508
        %v510 = vpop.f32.mrb[0].mxu0
        %v511 = vadd.f32 %v321, %v510
        %v512 = vpop.f32.mrb[0].mxu0
        %v513 = vadd.f32 %v317, %v512
        %v514 = vpop.f32.mrb[0].mxu0
        %v515 = vadd.f32 %v321, %v514
        %516 = vdwg.mxu0
        %v517 = vpack.c.bf16 %v443, %v439
        %v518 = vpack.c.bf16 %v445, %v441
        %v519 = vpack.c.bf16 %v453, %v449
        %v520 = vpack.c.bf16 %v455, %v451
        %v521 = vpack.c.bf16 %v463, %v459
        %v522 = vpack.c.bf16 %v465, %v461
        %v523 = vpack.c.bf16 %v473, %v469
        %v524 = vpack.c.bf16 %v475, %v471
        %v525 = vpack.c.bf16 %v483, %v479
        %v526 = vpack.c.bf16 %v485, %v481
        %v527 = vpack.c.bf16 %v493, %v489
        %v528 = vpack.c.bf16 %v495, %v491
        %v529 = vpack.c.bf16 %v503, %v499
        %v530 = vpack.c.bf16 %v505, %v501
        %v531 = vpack.c.bf16 %v513, %v509
        %v532 = vpack.c.bf16 %v515, %v511
        %v533 = vtanh.bf16.pop %v517
        %v534 = vtanh.bf16.pop %v519
        %v535 = vtanh.bf16.pop %v521
        %v536 = vtanh.bf16.pop %v523
        %v537 = vtanh.bf16.pop %v525
        %v538 = vtanh.bf16.pop %v527
        %v539 = vtanh.bf16.pop %v529
        %v540 = vtanh.bf16.pop %v531
        %v541 = vmul.bf16 %v518, 1056980736
        %v542 = vmul.bf16 %v520, 1056980736
        %v543 = vmul.bf16 %v522, 1056980736
        %v544 = vmul.bf16 %v524, 1056980736
        %v545 = vmul.bf16 %v526, 1056980736
        %v546 = vmul.bf16 %v528, 1056980736
        %v547 = vmul.bf16 %v530, 1056980736
        %v548 = vmul.bf16 %v532, 1056980736
        %v549 = vtanh.bf16.pop %v541
        %v550 = vtanh.bf16.pop %v542
        %v551 = vtanh.bf16.pop %v543
        %v552 = vtanh.bf16.pop %v544
        %v553 = vtanh.bf16.pop %v545
        %v554 = vtanh.bf16.pop %v546
        %v555 = vtanh.bf16.pop %v547
        %v556 = vtanh.bf16.pop %v548
        %v557 = vadd.bf16 %v549, 1065369472
        %v558 = vadd.bf16 %v550, 1065369472
        %v559 = vadd.bf16 %v551, 1065369472
        %v560 = vadd.bf16 %v552, 1065369472
        %v561 = vadd.bf16 %v553, 1065369472
        %v562 = vadd.bf16 %v554, 1065369472
        %v563 = vadd.bf16 %v555, 1065369472
        %v564 = vadd.bf16 %v556, 1065369472
        %v565 = vmul.bf16 %v557, 1056980736
        %v566 = vmul.bf16 %v558, 1056980736
        %v567 = vmul.bf16 %v559, 1056980736
        %v568 = vmul.bf16 %v560, 1056980736
        %v569 = vmul.bf16 %v561, 1056980736
        %v570 = vmul.bf16 %v562, 1056980736
        %v571 = vmul.bf16 %v563, 1056980736
        %v572 = vmul.bf16 %v564, 1056980736
        %v573 = vmul.bf16 %v533, %v565
        %v574 = vmul.bf16 %v534, %v566
        %v575 = vmul.bf16 %v535, %v567
        %v576 = vmul.bf16 %v536, %v568
        %v577 = vmul.bf16 %v537, %v569
        %v578 = vmul.bf16 %v538, %v570
        %v579 = vmul.bf16 %v539, %v571
        %v580 = vmul.bf16 %v540, %v572
        %v581 = vld [vmem:[%s3] sm:$0x1]
        %v583 = vpack.i.b16 %v581, %v581
        %v585 = vlaneseq
        %v586 = vshrl.u32 %v585, 7
        %v587 = vsub.s32 0, %v586
        %v588 = vrot.slane %v583, %v587
        %v589 = vmul.bf16 %v573, %v588
        %v590 = vmul.bf16 %v574, %v588
        %v591 = vmul.bf16 %v575, %v588
        %v592 = vmul.bf16 %v576, %v588
        %v593 = vmul.bf16 %v577, %v588
        %v594 = vmul.bf16 %v578, %v588
        %v595 = vmul.bf16 %v579, %v588
        %v596 = vmul.bf16 %v580, %v588
        %v597 = vunpack.c.l.bf16 %v589
        %v598 = vunpack.c.h.bf16 %v589
        %v599 = vunpack.c.l.bf16 %v590
        %v600 = vunpack.c.h.bf16 %v590
        %v601 = vunpack.c.l.bf16 %v591
        %v602 = vunpack.c.h.bf16 %v591
        %v603 = vunpack.c.l.bf16 %v592
        %v604 = vunpack.c.h.bf16 %v592
        %v605 = vunpack.c.l.bf16 %v593
        %v606 = vunpack.c.h.bf16 %v593
        %v607 = vunpack.c.l.bf16 %v594
        %v608 = vunpack.c.h.bf16 %v594
        %v609 = vunpack.c.l.bf16 %v595
        %v610 = vunpack.c.h.bf16 %v595
        %v611 = vunpack.c.l.bf16 %v596
        %v612 = vunpack.c.h.bf16 %v596
        %613 = vadd.xlane.f32.xlu0 %v597
        %v614 = vpop.xlane.xlu0 %613
        %615 = vadd.xlane.f32.xlu0 %v598
        %v616 = vpop.xlane.xlu0 %615
        %617 = vadd.xlane.f32.xlu0 %v599
        %v618 = vpop.xlane.xlu0 %617
        %619 = vadd.xlane.f32.xlu0 %v600
        %v620 = vpop.xlane.xlu0 %619
        %621 = vadd.xlane.f32.xlu0 %v601
        %v622 = vpop.xlane.xlu0 %621
        %623 = vadd.xlane.f32.xlu0 %v602
        %v624 = vpop.xlane.xlu0 %623
        %625 = vadd.xlane.f32.xlu0 %v603
        %v626 = vpop.xlane.xlu0 %625
        %627 = vadd.xlane.f32.xlu0 %v604
        %v628 = vpop.xlane.xlu0 %627
        %629 = vadd.xlane.f32.xlu0 %v605
        %v630 = vpop.xlane.xlu0 %629
        %631 = vadd.xlane.f32.xlu0 %v606
        %v632 = vpop.xlane.xlu0 %631
        %633 = vadd.xlane.f32.xlu0 %v607
        %v634 = vpop.xlane.xlu0 %633
        %635 = vadd.xlane.f32.xlu0 %v608
        %v636 = vpop.xlane.xlu0 %635
        %637 = vadd.xlane.f32.xlu0 %v609
        %v638 = vpop.xlane.xlu0 %637
        %639 = vadd.xlane.f32.xlu0 %v610
        %v640 = vpop.xlane.xlu0 %639
        %641 = vadd.xlane.f32.xlu0 %v611
        %v642 = vpop.xlane.xlu0 %641
        %643 = vadd.xlane.f32.xlu0 %v612
        %v644 = vpop.xlane.xlu0 %643
        %v645 = vpack.c.bf16 %v616, %v614
        %v646 = vpack.c.bf16 %v620, %v618
        %v647 = vpack.c.bf16 %v624, %v622
        %v648 = vpack.c.bf16 %v628, %v626
        %v649 = vpack.c.bf16 %v632, %v630
        %v650 = vpack.c.bf16 %v636, %v634
        %v651 = vpack.c.bf16 %v640, %v638
        %v652 = vpack.c.bf16 %v644, %v642
        %v653 = vunpack.c.l.bf16 %v645
        %v654 = vunpack.c.h.bf16 %v645
        %v655 = vunpack.c.l.bf16 %v646
        %v656 = vunpack.c.h.bf16 %v646
        %v657 = vunpack.c.l.bf16 %v647
        %v658 = vunpack.c.h.bf16 %v647
        %v659 = vunpack.c.l.bf16 %v648
        %v660 = vunpack.c.h.bf16 %v648
        %v661 = vunpack.c.l.bf16 %v649
        %v662 = vunpack.c.h.bf16 %v649
        %v663 = vunpack.c.l.bf16 %v650
        %v664 = vunpack.c.h.bf16 %v650
        %v665 = vunpack.c.l.bf16 %v651
        %v666 = vunpack.c.h.bf16 %v651
        %v667 = vunpack.c.l.bf16 %v652
        %v668 = vunpack.c.h.bf16 %v652
        %s669 = sld [smem:[#allocation2]]
        %v670 = vstv %s669
        %v671 = vadd.f32 %v653, %v670
        %v672 = vadd.f32 %v654, %v670
        %v673 = vadd.f32 %v655, %v670
        %v674 = vadd.f32 %v656, %v670
        %v675 = vadd.f32 %v657, %v670
        %v676 = vadd.f32 %v658, %v670
        %v677 = vadd.f32 %v659, %v670
        %v678 = vadd.f32 %v660, %v670
        %v679 = vadd.f32 %v661, %v670
        %v680 = vadd.f32 %v662, %v670
        %v681 = vadd.f32 %v663, %v670
        %v682 = vadd.f32 %v664, %v670
        %v683 = vadd.f32 %v665, %v670
        %v684 = vadd.f32 %v666, %v670
        %v685 = vadd.f32 %v667, %v670
        %v686 = vadd.f32 %v668, %v670
        %v703 = vlaneseq
        %v704 = vand.u32 %v703, 127
        %v705 = vlaneseq
        %v706 = vshrl.u32 %v705, 7
        %v707 = vsub.s32 %v704, %v706
        %v708 = vrot.slane %v671, %v707
        %v709 = vadd.s32 %v704, 4294967288
        %v710 = vlaneseq
        %v711 = vshrl.u32 %v710, 7
        %v712 = vsub.s32 %v709, %v711
        %v713 = vrot.slane %v672, %v712
        %vm714 = vcmask 130112
        %v715 = vsel %vm714, %v713, %v708
        %v716 = vadd.s32 %v704, 4294967280
        %v717 = vlaneseq
        %v718 = vshrl.u32 %v717, 7
        %v719 = vsub.s32 %v716, %v718
        %v720 = vrot.slane %v673, %v719
        %vm721 = vcmask 195712
        %v722 = vsel %vm721, %v720, %v715
        %v723 = vadd.s32 %v704, 4294967272
        %v724 = vlaneseq
        %v725 = vshrl.u32 %v724, 7
        %v726 = vsub.s32 %v723, %v725
        %v727 = vrot.slane %v674, %v726
        %vm728 = vcmask 261312
        %v729 = vsel %vm728, %v727, %v722
        %v730 = vadd.s32 %v704, 4294967264
        %v731 = vlaneseq
        %v732 = vshrl.u32 %v731, 7
        %v733 = vsub.s32 %v730, %v732
        %v734 = vrot.slane %v675, %v733
        %vm735 = vcmask 326912
        %v736 = vsel %vm735, %v734, %v729
        %v737 = vadd.s32 %v704, 4294967256
        %v738 = vlaneseq
        %v739 = vshrl.u32 %v738, 7
        %v740 = vsub.s32 %v737, %v739
        %v741 = vrot.slane %v676, %v740
        %vm742 = vcmask 392512
        %v743 = vsel %vm742, %v741, %v736
        %v744 = vadd.s32 %v704, 4294967248
        %v745 = vlaneseq
        %v746 = vshrl.u32 %v745, 7
        %v747 = vsub.s32 %v744, %v746
        %v748 = vrot.slane %v677, %v747
        %vm749 = vcmask 458112
        %v750 = vsel %vm749, %v748, %v743
        %v751 = vadd.s32 %v704, 4294967240
        %v752 = vlaneseq
        %v753 = vshrl.u32 %v752, 7
        %v754 = vsub.s32 %v751, %v753
        %v755 = vrot.slane %v678, %v754
        %vm756 = vcmask 523712
        %v757 = vsel %vm756, %v755, %v750
        %v758 = vadd.s32 %v704, 4294967232
        %v759 = vlaneseq
        %v760 = vshrl.u32 %v759, 7
        %v761 = vsub.s32 %v758, %v760
        %v762 = vrot.slane %v679, %v761
        %vm763 = vcmask 589312
        %v764 = vsel %vm763, %v762, %v757
        %v765 = vadd.s32 %v704, 4294967224
        %v766 = vlaneseq
        %v767 = vshrl.u32 %v766, 7
        %v768 = vsub.s32 %v765, %v767
        %v769 = vrot.slane %v680, %v768
        %vm770 = vcmask 654912
        %v771 = vsel %vm770, %v769, %v764
        %v772 = vadd.s32 %v704, 4294967216
        %v773 = vlaneseq
        %v774 = vshrl.u32 %v773, 7
        %v775 = vsub.s32 %v772, %v774
        %v776 = vrot.slane %v681, %v775
        %vm777 = vcmask 720512
        %v778 = vsel %vm777, %v776, %v771
        %v779 = vadd.s32 %v704, 4294967208
        %v780 = vlaneseq
        %v781 = vshrl.u32 %v780, 7
        %v782 = vsub.s32 %v779, %v781
        %v783 = vrot.slane %v682, %v782
        %vm784 = vcmask 786112
        %v785 = vsel %vm784, %v783, %v778
        %v786 = vadd.s32 %v704, 4294967200
        %v787 = vlaneseq
        %v788 = vshrl.u32 %v787, 7
        %v789 = vsub.s32 %v786, %v788
        %v790 = vrot.slane %v683, %v789
        %vm791 = vcmask 851712
        %v792 = vsel %vm791, %v790, %v785
        %v793 = vadd.s32 %v704, 4294967192
        %v794 = vlaneseq
        %v795 = vshrl.u32 %v794, 7
        %v796 = vsub.s32 %v793, %v795
        %v797 = vrot.slane %v684, %v796
        %vm798 = vcmask 917312
        %v799 = vsel %vm798, %v797, %v792
        %v800 = vadd.s32 %v704, 4294967184
        %v801 = vlaneseq
        %v802 = vshrl.u32 %v801, 7
        %v803 = vsub.s32 %v800, %v802
        %v804 = vrot.slane %v685, %v803
        %vm805 = vcmask 982912
        %v806 = vsel %vm805, %v804, %v799
        %v807 = vadd.s32 %v704, 4294967176
        %v808 = vlaneseq
        %v809 = vshrl.u32 %v808, 7
        %v810 = vsub.s32 %v807, %v809
        %v811 = vrot.slane %v686, %v810
        %vm812 = vcmask 1048512
        %v813 = vsel %vm812, %v811, %v806
        %815 = vst [vmem:[%s263] sm:$0x1] %v813
        %s816 = sand.u32 %s142, 1
        %s817 = scalar_lea.sflag [#allocation5], %s816
        %s818 = sand.u32 %s142, 1
        %s819 = scalar_lea.vmem [#allocation8], %s818
        // Predicated region
        $region49: #{tpu_custom_call.1} parent=39 // pred_check
          %p820 = pneg %p152
        $region50: #{tpu_custom_call.1} parent=39 // pred_check_branch
          %822 = sbr.rel (%p820) target = $region52
        $region51: #{tpu_custom_call.1} parent=39 // pred_region
          %s824 = ssub.s32 16, 16
          %825 = vsyncadd %s817, %s824
          %s826 = smul.addr %s24, 16
          %s827 = scalar_lea.hbm %s5, %s826
          %s829 = sshll.u32 %s819, 4
          %s830 = int_to_ptr.vmem [resolvable:$true] %s829
          %832 = dma.vmem_to_hbm [thread:$0]  %s830, 16, %s827, %s817
        $region52: #{tpu_custom_call.1} parent=39 // pred_fallthru
          _
      $region40: #{tpu_custom_call.1} parent=5 // pred_fallthru
        _
      %p833 = scmp.le.s32.totalorder 2, %s19
      // Predicated region
      $region53: #{tpu_custom_call.1} parent=5 // pred_check
        %p834 = pneg %p833
      $region54: #{tpu_custom_call.1} parent=5 // pred_check_branch
        %836 = sbr.rel (%p834) target = $region56
      $region55: #{tpu_custom_call.1} parent=5 // pred_region
        %s837 = ssub.s32 %s19, 2
        // Predicated region
        $region57: #{tpu_custom_call.1} parent=55 // pred_check
          %p838 = pneg %p158
        $region58: #{tpu_custom_call.1} parent=55 // pred_check_branch
          %840 = sbr.rel (%p838) target = $region60
        $region59: #{tpu_custom_call.1} parent=55 // pred_region
          %s841 = sand.u32 %s143, 1
          %s842 = scalar_lea.sflag [#allocation5], %s841
          %s843 = sand.u32 %s143, 1
          %s844 = scalar_lea.vmem [#allocation8], %s843
          %845 = dma.done %s842, 16
        $region60: #{tpu_custom_call.1} parent=55 // pred_fallthru
          _
      $region56: #{tpu_custom_call.1} parent=5 // pred_fallthru
        _
    $region6: #{tpu_custom_call.1} parent=1 // loop_footer
      %s23 = sadd.s32 1, %s19
    $region7: #{tpu_custom_call.1} parent=1 // loop_footer_branch
      %18 = sbr.rel target = $region3
    $region8: #{tpu_custom_call.1} parent=1 // loop_exit
      _
    %846 = vsyncpa [#allocation4], 1
    %s847 = scalar_lea.sflag [#allocation4], 1
    %848 = vsyncpa %s847, 1
    %849 = vsyncpa [#allocation7], 1
    %850 = vsyncpa [#allocation5], 1
    %s851 = scalar_lea.sflag [#allocation5], 1
    %852 = vsyncpa %s851, 1

// kernel: tpu_custom_call.1
$region0: #{tpu_custom_call.1}
  #allocation0 [shape = 'u32[]', space=smem, size = 0x4, offset = 0x4, fixed_abs, tag = 'smem constant byte address 0x4 - core index']
  #allocation1 [shape = 'u32[144,128]{1,0:T(1,128)}', space=vmem, size = 0x12000, scoped, tag = 'internal scratch']
  #allocation2 [shape = 'f32[1]{0:T(128)S(6)}', space=smem, size = 0x200, scoped, tag = 'scoped memory for tpu_custom_call.1']
  %s0 = inlined_call_operand.hbm [shape: f32[200,128], index: 0, kind: input, shape index: {}]
  %s1 = inlined_call_operand.hbm [shape: bf16[128,256], index: 1, kind: input, shape index: {}]
  %s2 = inlined_call_operand.vmem [shape: f32[1,256], index: 2, kind: input, shape index: {}]
  %s3 = inlined_call_operand.vmem [shape: bf16[1,128], index: 3, kind: input, shape index: {}]
  %s4 = inlined_call_operand.<no memory space> [shape: f32[1], index: 4, kind: input, shape index: {}]
  %s5 = inlined_call_operand.hbm [shape: f32[2,1,128], index: 5, kind: output, shape index: {}]
  %s6 = sld [smem:[#allocation0]]
  $region61: #{tpu_custom_call.1} parent=0
    _
  %s8 = ssub.s32 1, %s6
  %s9 = scalar_select 0, %s8, %s6
  %10 = sst [smem:[#allocation2]] %s4
  $region1: #{tpu_custom_call.1} parent=0
    #allocation3 [shape = 'u8[131072]{0}', space=vmem, size = 0x20000, scoped, tag = 'input window, operand 0']
    #allocation4 [shape = 's32[2]{0}', space=sflag, size = 0x8, scoped, tag = 'scoped memory for tpu_custom_call.1']
    #allocation5 [shape = 's32[2]{0}', space=sflag, size = 0x8, scoped, tag = 'scoped memory for tpu_custom_call.1']
    #allocation6 [shape = 'u8[65536]{0}', space=vmem, size = 0x10000, scoped, tag = 'input window, operand 1, single buffered']
    #allocation7 [shape = 's32[1]{0}', space=sflag, size = 0x4, scoped, tag = 'scoped memory for tpu_custom_call.1']
    #allocation8 [shape = 'u8[1024]{0}', space=vmem, size = 0x400, scoped, tag = 'output window, operand 0']
    %11 = vsyncpa [#allocation4], 0
    %s12 = scalar_lea.sflag [#allocation4], 1
    %13 = vsyncpa %s12, 0
    %14 = vsyncpa [#allocation7], 0
    %15 = vsyncpa [#allocation5], 0
    %s16 = scalar_lea.sflag [#allocation5], 1
    %17 = vsyncpa %s16, 0
    loop: start=0, step=1, limit=4
    $region2: #{tpu_custom_call.1} parent=1 // loop_pre_header
      _
    $region3: #{tpu_custom_call.1} parent=1 // loop_header
      %s19 = sphi 0, %s23
      %p20 = scmp.ge.s32.totalorder %s19, 4
      %s29 = sphi 0, %s31
      %s32 = sphi 0, %s29
      %s33 = sphi 0, %s32
      %s49 = sphi 0, %s33
      %s53 = sphi 0, %s53
      %s55 = sphi 0, %s53
      %s56 = sphi 0, %s55
      %s70 = sphi 0, %s56
      %s74 = sphi 0, %s74
      %s76 = sphi 0, %s74
      %s77 = sphi 0, %s76
      %s91 = sphi 0, %s77
      %s95 = sphi 0, %s95
      %s97 = sphi 0, %s95
      %s98 = sphi 0, %s97
      %s112 = sphi 0, %s98
      %s116 = sphi 0, %s116
      %s118 = sphi 0, %s116
      %s119 = sphi 0, %s118
      %s133 = sphi 0, %s119
      %s139 = sphi 0, %s141
      %s142 = sphi 0, %s139
      %s143 = sphi 0, %s142
      %s159 = sphi 0, %s143
    $region4: #{tpu_custom_call.1} parent=1 // loop_header_branch
      %22 = sbr.rel (%p20) target = $region8
    $region5: #{tpu_custom_call.1} parent=1 // loop_body
      %s24 = ssub.s32 %s19, 1
      %s25 = ssub.s32 %s19, 2
      %s26 = sadd.s32 %s19, 1
      %s27 = ssub.s32 %s19, %s26
      %p28 = scmp.eq.s32.totalorder %s27, 0
      %s30 = sadd.s32 %s29, 1
      %s31 = scalar_select %p28, %s29, %s30
      %p34 = pneg %p28
      %p35 = scmp.eq.s32.totalorder %s19, 1
      %p36 = por %p34, %p35
      %p37 = scmp.ne.s32.totalorder %s29, %s32
      %p38 = scmp.eq.s32.totalorder %s19, 0
      %p39 = por %p37, %p38
      %p40 = scmp.ne.s32.totalorder %s29, %s32
      %p41 = scmp.eq.s32.totalorder %s24, 1
      %p42 = por %p40, %p41
      %p43 = scmp.ne.s32.totalorder %s32, %s33
      %p44 = scmp.eq.s32.totalorder %s24, 0
      %p45 = por %p43, %p44
      %p46 = scmp.ne.s32.totalorder %s32, %s33
      %p47 = scmp.eq.s32.totalorder %s25, 1
      %p48 = por %p46, %p47
      %p50 = scmp.ne.s32.totalorder %s33, %s49
      %p51 = scmp.eq.s32.totalorder %s25, 0
      %p52 = por %p50, %p51
      %s54 = sadd.s32 %s53, 1
      %p57 = scmp.eq.s32.totalorder %s19, 1
      %p58 = scmp.ne.s32.totalorder %s53, %s55
      %p59 = scmp.eq.s32.totalorder %s19, 0
      %p60 = por %p58, %p59
      %p61 = scmp.ne.s32.totalorder %s53, %s55
      %p62 = scmp.eq.s32.totalorder %s24, 1
      %p63 = por %p61, %p62
      %p64 = scmp.ne.s32.totalorder %s55, %s56
      %p65 = scmp.eq.s32.totalorder %s24, 0
      %p66 = por %p64, %p65
      %p67 = scmp.ne.s32.totalorder %s55, %s56
      %p68 = scmp.eq.s32.totalorder %s25, 1
      %p69 = por %p67, %p68
      %p71 = scmp.ne.s32.totalorder %s56, %s70
      %p72 = scmp.eq.s32.totalorder %s25, 0
      %p73 = por %p71, %p72
      %s75 = sadd.s32 %s74, 1
      %p78 = scmp.eq.s32.totalorder %s19, 1
      %p79 = scmp.ne.s32.totalorder %s74, %s76
      %p80 = scmp.eq.s32.totalorder %s19, 0
      %p81 = por %p79, %p80
      %p82 = scmp.ne.s32.totalorder %s74, %s76
      %p83 = scmp.eq.s32.totalorder %s24, 1
      %p84 = por %p82, %p83
      %p85 = scmp.ne.s32.totalorder %s76, %s77
      %p86 = scmp.eq.s32.totalorder %s24, 0
      %p87 = por %p85, %p86
      %p88 = scmp.ne.s32.totalorder %s76, %s77
      %p89 = scmp.eq.s32.totalorder %s25, 1
      %p90 = por %p88, %p89
      %p92 = scmp.ne.s32.totalorder %s77, %s91
      %p93 = scmp.eq.s32.totalorder %s25, 0
      %p94 = por %p92, %p93
      %s96 = sadd.s32 %s95, 1
      %p99 = scmp.eq.s32.totalorder %s19, 1
      %p100 = scmp.ne.s32.totalorder %s95, %s97
      %p101 = scmp.eq.s32.totalorder %s19, 0
      %p102 = por %p100, %p101
      %p103 = scmp.ne.s32.totalorder %s95, %s97
      %p104 = scmp.eq.s32.totalorder %s24, 1
      %p105 = por %p103, %p104
      %p106 = scmp.ne.s32.totalorder %s97, %s98
      %p107 = scmp.eq.s32.totalorder %s24, 0
      %p108 = por %p106, %p107
      %p109 = scmp.ne.s32.totalorder %s97, %s98
      %p110 = scmp.eq.s32.totalorder %s25, 1
      %p111 = por %p109, %p110
      %p113 = scmp.ne.s32.totalorder %s98, %s112
      %p114 = scmp.eq.s32.totalorder %s25, 0
      %p115 = por %p113, %p114
      %s117 = sadd.s32 %s116, 1
      %p120 = scmp.eq.s32.totalorder %s19, 1
      %p121 = scmp.ne.s32.totalorder %s116, %s118
      %p122 = scmp.eq.s32.totalorder %s19, 0
      %p123 = por %p121, %p122
      %p124 = scmp.ne.s32.totalorder %s116, %s118
      %p125 = scmp.eq.s32.totalorder %s24, 1
      %p126 = por %p124, %p125
      %p127 = scmp.ne.s32.totalorder %s118, %s119
      %p128 = scmp.eq.s32.totalorder %s24, 0
      %p129 = por %p127, %p128
      %p130 = scmp.ne.s32.totalorder %s118, %s119
      %p131 = scmp.eq.s32.totalorder %s25, 1
      %p132 = por %p130, %p131
      %p134 = scmp.ne.s32.totalorder %s119, %s133
      %p135 = scmp.eq.s32.totalorder %s25, 0
      %p136 = por %p134, %p135
      %s137 = ssub.s32 %s19, %s26
      %p138 = scmp.eq.s32.totalorder %s137, 0
      %s140 = sadd.s32 %s139, 1
      %s141 = scalar_select %p138, %s139, %s140
      %p144 = pneg %p138
      %p145 = scmp.eq.s32.totalorder %s19, 1
      %p146 = por %p144, %p145
      %p147 = scmp.ne.s32.totalorder %s139, %s142
      %p148 = scmp.eq.s32.totalorder %s19, 0
      %p149 = por %p147, %p148
      %p150 = scmp.ne.s32.totalorder %s139, %s142
      %p151 = scmp.eq.s32.totalorder %s24, 1
      %p152 = por %p150, %p151
      %p153 = scmp.ne.s32.totalorder %s142, %s143
      %p154 = scmp.eq.s32.totalorder %s24, 0
      %p155 = por %p153, %p154
      %p156 = scmp.ne.s32.totalorder %s142, %s143
      %p157 = scmp.eq.s32.totalorder %s25, 1
      %p158 = por %p156, %p157
      %p160 = scmp.ne.s32.totalorder %s143, %s159
      %p161 = scmp.eq.s32.totalorder %s25, 0
      %p162 = por %p160, %p161
      %p163 = scmp.le.s32.totalorder 1, %s19
      %p164 = scmp.lt.s32.totalorder %s19, 3
      %p165 = pnand %p163, %p164
      %p166 = pneg %p165
      // Predicated region
      $region9: #{tpu_custom_call.1} parent=5 // pred_check
        _
      $region10: #{tpu_custom_call.1} parent=5 // pred_check_branch
        %168 = sbr.rel (%p165) target = $region12
      $region11: #{tpu_custom_call.1} parent=5 // pred_region
        %s169 = ssub.s32 %s19, 1
        // Predicated region
        $region13: #{tpu_custom_call.1} parent=11 // pred_check
          %p170 = pneg %p66
        $region14: #{tpu_custom_call.1} parent=11 // pred_check_branch
          %172 = sbr.rel (%p170) target = $region16
        $region15: #{tpu_custom_call.1} parent=11 // pred_region
          %s174 = ssub.s32 2048, 2048
          %175 = vsyncadd [#allocation7], %s174
          %s176 = sshll.u32 [#allocation6], 4
          %s177 = int_to_ptr.vmem [resolvable:$true] %s176
          %182 = dma.hbm_to_vmem [thread:$0]  %s1, 2048, %s177, [#allocation7], 128, 128, 8
        $region16: #{tpu_custom_call.1} parent=11 // pred_fallthru
          _
        // Predicated region
        $region17: #{tpu_custom_call.1} parent=11 // pred_check
          %p183 = pneg %p87
        $region18: #{tpu_custom_call.1} parent=11 // pred_check_branch
          %185 = sbr.rel (%p183) target = $region20
        $region19: #{tpu_custom_call.1} parent=11 // pred_region
          _
        $region20: #{tpu_custom_call.1} parent=11 // pred_fallthru
          _
        // Predicated region
        $region21: #{tpu_custom_call.1} parent=11 // pred_check
          %p186 = pneg %p108
        $region22: #{tpu_custom_call.1} parent=11 // pred_check_branch
          %188 = sbr.rel (%p186) target = $region24
        $region23: #{tpu_custom_call.1} parent=11 // pred_region
          _
        $region24: #{tpu_custom_call.1} parent=11 // pred_fallthru
          _
        // Predicated region
        $region25: #{tpu_custom_call.1} parent=11 // pred_check
          %p189 = pneg %p129
        $region26: #{tpu_custom_call.1} parent=11 // pred_check_branch
          %191 = sbr.rel (%p189) target = $region28
        $region27: #{tpu_custom_call.1} parent=11 // pred_region
          _
        $region28: #{tpu_custom_call.1} parent=11 // pred_fallthru
          _
      $region12: #{tpu_custom_call.1} parent=5 // pred_fallthru
        _
      %p192 = scmp.lt.s32.totalorder %s19, 2
      // Predicated region
      $region29: #{tpu_custom_call.1} parent=5 // pred_check
        %p193 = pneg %p192
      $region30: #{tpu_custom_call.1} parent=5 // pred_check_branch
        %195 = sbr.rel (%p193) target = $region32
      $region31: #{tpu_custom_call.1} parent=5 // pred_region
        // Predicated region
        $region33: #{tpu_custom_call.1} parent=31 // pred_check
          %p196 = pneg %p39
        $region34: #{tpu_custom_call.1} parent=31 // pred_check_branch
          %198 = sbr.rel (%p196) target = $region36
        $region35: #{tpu_custom_call.1} parent=31 // pred_region
          %s199 = sand.u32 %s29, 1
          %s200 = scalar_lea.sflag [#allocation4], %s199
          %s201 = sand.u32 %s29, 1
          %s202 = smul.addr %s201, 128
          %s203 = scalar_lea.vmem [#allocation3], %s202
          %s204 = smul.u32 16, %s19
          %s205 = ssub.s32 25, %s204
          %p206 = scmp.lt.s32.totalorder %s205, 16
          %s207 = scalar_select %p206, %s205, 16
          %s208 = smul.u32 128, %s207
          %s210 = ssub.s32 2048, %s208
          %211 = vsyncadd %s200, %s210
          %p212 = scmp.ne.s32.totalorder 0, %s208
          %s213 = smul.addr %s204, 128
          %s214 = scalar_lea.hbm %s0, %s213
          %s215 = smul.u32 8, %s207
          %s216 = sshll.u32 %s203, 4
          %s217 = int_to_ptr.vmem [resolvable:$true] %s216
          %s218 = sshll.u32 %s215, 4
          %222 = dma.hbm_to_vmem [thread:$0]  (%p212), %s214, %s218, %s217, %s200, 128, 128, 8
        $region36: #{tpu_custom_call.1} parent=31 // pred_fallthru
          _
      $region32: #{tpu_custom_call.1} parent=5 // pred_fallthru
        _
      %p223 = scmp.le.s32.totalorder 1, %s19
      %p224 = scmp.lt.s32.totalorder %s19, 3
      %p225 = pnand %p223, %p224
      %p226 = pneg %p225
      // Predicated region
      $region37: #{tpu_custom_call.1} parent=5 // pred_check
        _
      $region38: #{tpu_custom_call.1} parent=5 // pred_check_branch
        %228 = sbr.rel (%p225) target = $region40
      $region39: #{tpu_custom_call.1} parent=5 // pred_region
        %s229 = ssub.s32 %s19, 1
        %s230 = sand.u32 %s32, 1
        %s231 = scalar_lea.sflag [#allocation4], %s230
        %s232 = sand.u32 %s32, 1
        %s233 = smul.addr %s232, 128
        %s234 = scalar_lea.vmem [#allocation3], %s233
        // Predicated region
        $region41: #{tpu_custom_call.1} parent=39 // pred_check
          %p235 = pneg %p45
        $region42: #{tpu_custom_call.1} parent=39 // pred_check_branch
          %237 = sbr.rel (%p235) target = $region44
        $region43: #{tpu_custom_call.1} parent=39 // pred_region
          %238 = dma.done %s231, 2048
        $region44: #{tpu_custom_call.1} parent=39 // pred_fallthru
          _
        // Predicated region
        $region45: #{tpu_custom_call.1} parent=39 // pred_check
          %p239 = pneg %p66
        $region46: #{tpu_custom_call.1} parent=39 // pred_check_branch
          %241 = sbr.rel (%p239) target = $region48
        $region47: #{tpu_custom_call.1} parent=39 // pred_region
          %242 = dma.done [#allocation7], 2048
        $region48: #{tpu_custom_call.1} parent=39 // pred_fallthru
          _
        %s243 = sand.u32 %s32, 1
        %s244 = scalar_lea.sflag [#allocation4], %s243
        %s245 = sand.u32 %s32, 1
        %s246 = smul.addr %s245, 128
        %s247 = scalar_lea.vmem [#allocation3], %s246
        %p248 = pneg %p45
        %p249 = pneg %p42
        %p250 = pneg %p66
        %p251 = pneg %p63
        %p252 = pneg %p87
        %p253 = pneg %p84
        %p254 = pneg %p108
        %p255 = pneg %p105
        %p256 = pneg %p129
        %p257 = pneg %p126
        %p258 = pneg %p155
        %p259 = pneg %p152
        %s260 = sand.u32 %s142, 1
        %s261 = scalar_lea.sflag [#allocation5], %s260
        %s262 = sand.u32 %s142, 1
        %s263 = scalar_lea.vmem [#allocation8], %s262
        %s264 = smul.u32 16, %s24
        %s265 = ssub.s32 25, %s264
        %p266 = scmp.lt.s32.totalorder %s265, 16
        %s267 = scalar_select %p266, %s265, 16
        %s268 = smul.u32 128, %s267
        %v272 = vld [vmem:[%s234] sm:$0xff]
        %v273 = vld [vmem:[%s234 + $0x8] sm:$0xff]
        %v274 = vld [vmem:[%s234 + $0x10] sm:$0xff]
        %v275 = vld [vmem:[%s234 + $0x18] sm:$0xff]
        %v276 = vld [vmem:[%s234 + $0x20] sm:$0xff]
        %v277 = vld [vmem:[%s234 + $0x28] sm:$0xff]
        %v278 = vld [vmem:[%s234 + $0x30] sm:$0xff]
        %v279 = vld [vmem:[%s234 + $0x38] sm:$0xff]
        %v280 = vld [vmem:[%s234 + $0x40] sm:$0xff]
        %v281 = vld [vmem:[%s234 + $0x48] sm:$0xff]
        %v282 = vld [vmem:[%s234 + $0x50] sm:$0xff]
        %v283 = vld [vmem:[%s234 + $0x58] sm:$0xff]
        %v284 = vld [vmem:[%s234 + $0x60] sm:$0xff]
        %v285 = vld [vmem:[%s234 + $0x68] sm:$0xff]
        %v286 = vld [vmem:[%s234 + $0x70] sm:$0xff]
        %v287 = vld [vmem:[%s234 + $0x78] sm:$0xff]
        %v288 = vpack.c.bf16 %v273, %v272
        %v289 = vpack.c.bf16 %v275, %v274
        %v290 = vpack.c.bf16 %v277, %v276
        %v291 = vpack.c.bf16 %v279, %v278
        %v292 = vpack.c.bf16 %v281, %v280
        %v293 = vpack.c.bf16 %v283, %v282
        %v294 = vpack.c.bf16 %v285, %v284
        %v295 = vpack.c.bf16 %v287, %v286
        %v296 = vld [vmem:[#allocation6] sm:$0xff]
        %v297 = vld [vmem:[#allocation6 + $0x8] sm:$0xff]
        %v298 = vld [vmem:[#allocation6 + $0x10] sm:$0xff]
        %v299 = vld [vmem:[#allocation6 + $0x18] sm:$0xff]
        %v300 = vld [vmem:[#allocation6 + $0x20] sm:$0xff]
        %v301 = vld [vmem:[#allocation6 + $0x28] sm:$0xff]
        %v302 = vld [vmem:[#allocation6 + $0x30] sm:$0xff]
        %v303 = vld [vmem:[#allocation6 + $0x38] sm:$0xff]
        %v304 = vld [vmem:[#allocation6 + $0x40] sm:$0xff]
        %v305 = vld [vmem:[#allocation6 + $0x48] sm:$0xff]
        %v306 = vld [vmem:[#allocation6 + $0x50] sm:$0xff]
        %v307 = vld [vmem:[#allocation6 + $0x58] sm:$0xff]
        %v308 = vld [vmem:[#allocation6 + $0x60] sm:$0xff]
        %v309 = vld [vmem:[#allocation6 + $0x68] sm:$0xff]
        %v310 = vld [vmem:[#allocation6 + $0x70] sm:$0xff]
        %v311 = vld [vmem:[#allocation6 + $0x78] sm:$0xff]
        %v312 = vld [vmem:[%s2] sm:$0x3]
        %v314 = vlaneseq
        %v315 = vshrl.u32 %v314, 7
        %v316 = vsub.s32 0, %v315
        %v317 = vrot.slane %v312, %v316
        %v318 = vlaneseq
        %v319 = vshrl.u32 %v318, 7
        %v320 = vsub.s32 1, %v319
        %v321 = vrot.slane %v312, %v320
        %v340 = vunpack.c.l.b16 %v296
        %v341 = vunpack.c.h.b16 %v296
        %v342 = vunpack.c.l.b16 %v297
        %v343 = vunpack.c.h.b16 %v297
        %v344 = vunpack.c.l.b16 %v298
        %v345 = vunpack.c.h.b16 %v298
        %v346 = vunpack.c.l.b16 %v299
        %v347 = vunpack.c.h.b16 %v299
        %v348 = vunpack.c.l.b16 %v300
        %v349 = vunpack.c.h.b16 %v300
        %v350 = vunpack.c.l.b16 %v301
        %v351 = vunpack.c.h.b16 %v301
        %v352 = vunpack.c.l.b16 %v302
        %v353 = vunpack.c.h.b16 %v302
        %v354 = vunpack.c.l.b16 %v303
        %v355 = vunpack.c.h.b16 %v303
        %v356 = vunpack.c.l.b16 %v304
        %v357 = vunpack.c.h.b16 %v304
        %v358 = vunpack.c.l.b16 %v305
        %v359 = vunpack.c.h.b16 %v305
        %v360 = vunpack.c.l.b16 %v306
        %v361 = vunpack.c.h.b16 %v306
        %v362 = vunpack.c.l.b16 %v307
        %v363 = vunpack.c.h.b16 %v307
        %v364 = vunpack.c.l.b16 %v308
        %v365 = vunpack.c.h.b16 %v308
        %v366 = vunpack.c.l.b16 %v309
        %v367 = vunpack.c.h.b16 %v309
        %v368 = vunpack.c.l.b16 %v310
        %v369 = vunpack.c.h.b16 %v310
        %v370 = vunpack.c.l.b16 %v311
        %v371 = vunpack.c.h.b16 %v311
        %v372 = vpack.c.b16 %v342, %v340
        %v373 = vpack.c.b16 %v343, %v341
        %v374 = vpack.c.b16 %v346, %v344
        %v375 = vpack.c.b16 %v347, %v345
        %v376 = vpack.c.b16 %v350, %v348
        %v377 = vpack.c.b16 %v351, %v349
        %v378 = vpack.c.b16 %v354, %v352
        %v379 = vpack.c.b16 %v355, %v353
        %v380 = vpack.c.b16 %v358, %v356
        %v381 = vpack.c.b16 %v359, %v357
        %v382 = vpack.c.b16 %v362, %v360
        %v383 = vpack.c.b16 %v363, %v361
        %v384 = vpack.c.b16 %v366, %v364
        %v385 = vpack.c.b16 %v367, %v365
        %v386 = vpack.c.b16 %v370, %v368
        %v387 = vpack.c.b16 %v371, %v369
        %404 = vmatprep.subr.bf16.mxu0 %v373
        %405 = vmatpush1.bf16.msra.mxu0 %v372
        %406 = vmatprep.subr.bf16.mxu0 %v375
        %407 = vmatpush1.bf16.msra.mxu0 %v374
        %408 = vmatprep.subr.bf16.mxu0 %v377
        %409 = vmatpush1.bf16.msra.mxu0 %v376
        %410 = vmatprep.subr.bf16.mxu0 %v379
        %411 = vmatpush1.bf16.msra.mxu0 %v378
        %412 = vmatprep.subr.bf16.mxu0 %v381
        %413 = vmatpush1.bf16.msra.mxu0 %v380
        %414 = vmatprep.subr.bf16.mxu0 %v383
        %415 = vmatpush1.bf16.msra.mxu0 %v382
        %416 = vmatprep.subr.bf16.mxu0 %v385
        %417 = vmatpush1.bf16.msra.mxu0 %v384
        %418 = vmatprep.subr.bf16.mxu0 %v387
        %419 = vmatpush1.bf16.msra.mxu0 %v386
        %420 = vmatprep.subr.bf16.mxu0 0
        %421 = vmatpush1.bf16.msra.mxu0 0
        %422 = vmatprep.subr.bf16.mxu0 0
        %423 = vmatpush1.bf16.msra.mxu0 0
        %424 = vmatprep.subr.bf16.mxu0 0
        %425 = vmatpush1.bf16.msra.mxu0 0
        %426 = vmatprep.subr.bf16.mxu0 0
        %427 = vmatpush1.bf16.msra.mxu0 0
        %428 = vmatprep.subr.bf16.mxu0 0
        %429 = vmatpush1.bf16.msra.mxu0 0
        %430 = vmatprep.subr.bf16.mxu0 0
        %431 = vmatpush1.bf16.msra.mxu0 0
        %432 = vmatprep.subr.bf16.mxu0 0
        %433 = vmatpush1.bf16.msra.mxu0 0
        %434 = vmatprep.subr.bf16.mxu0 0
        %435 = vmatpush1.bf16.msra.mxu0 0
        %436 = vmatprep.mubr.bf16.mxu0 0
        %437 = vmatmul.mubr.bf16.gmra.mrb[0].mxu0 %v288
        %v438 = vpop.f32.mrb[0].mxu0
        %v439 = vadd.f32 %v317, %v438
        %v440 = vpop.f32.mrb[0].mxu0
        %v441 = vadd.f32 %v321, %v440
        %v442 = vpop.f32.mrb[0].mxu0
        %v443 = vadd.f32 %v317, %v442
        %v444 = vpop.f32.mrb[0].mxu0
        %v445 = vadd.f32 %v321, %v444
        %446 = vmatprep.mubr.bf16.mxu0 0
        %447 = vmatmul.mubr.bf16.gmra.mrb[0].mxu0 %v289
        %v448 = vpop.f32.mrb[0].mxu0
        %v449 = vadd.f32 %v317, %v448
        %v450 = vpop.f32.mrb[0].mxu0
        %v451 = vadd.f32 %v321, %v450
        %v452 = vpop.f32.mrb[0].mxu0
        %v453 = vadd.f32 %v317, %v452
        %v454 = vpop.f32.mrb[0].mxu0
        %v455 = vadd.f32 %v321, %v454
        %456 = vmatprep.mubr.bf16.mxu0 0
        %457 = vmatmul.mubr.bf16.gmra.mrb[0].mxu0 %v290
        %v458 = vpop.f32.mrb[0].mxu0
        %v459 = vadd.f32 %v317, %v458
        %v460 = vpop.f32.mrb[0].mxu0
        %v461 = vadd.f32 %v321, %v460
        %v462 = vpop.f32.mrb[0].mxu0
        %v463 = vadd.f32 %v317, %v462
        %v464 = vpop.f32.mrb[0].mxu0
        %v465 = vadd.f32 %v321, %v464
        %466 = vmatprep.mubr.bf16.mxu0 0
        %467 = vmatmul.mubr.bf16.gmra.mrb[0].mxu0 %v291
        %v468 = vpop.f32.mrb[0].mxu0
        %v469 = vadd.f32 %v317, %v468
        %v470 = vpop.f32.mrb[0].mxu0
        %v471 = vadd.f32 %v321, %v470
        %v472 = vpop.f32.mrb[0].mxu0
        %v473 = vadd.f32 %v317, %v472
        %v474 = vpop.f32.mrb[0].mxu0
        %v475 = vadd.f32 %v321, %v474
        %476 = vmatprep.mubr.bf16.mxu0 0
        %477 = vmatmul.mubr.bf16.gmra.mrb[0].mxu0 %v292
        %v478 = vpop.f32.mrb[0].mxu0
        %v479 = vadd.f32 %v317, %v478
        %v480 = vpop.f32.mrb[0].mxu0
        %v481 = vadd.f32 %v321, %v480
        %v482 = vpop.f32.mrb[0].mxu0
        %v483 = vadd.f32 %v317, %v482
        %v484 = vpop.f32.mrb[0].mxu0
        %v485 = vadd.f32 %v321, %v484
        %486 = vmatprep.mubr.bf16.mxu0 0
        %487 = vmatmul.mubr.bf16.gmra.mrb[0].mxu0 %v293
        %v488 = vpop.f32.mrb[0].mxu0
        %v489 = vadd.f32 %v317, %v488
        %v490 = vpop.f32.mrb[0].mxu0
        %v491 = vadd.f32 %v321, %v490
        %v492 = vpop.f32.mrb[0].mxu0
        %v493 = vadd.f32 %v317, %v492
        %v494 = vpop.f32.mrb[0].mxu0
        %v495 = vadd.f32 %v321, %v494
        %496 = vmatprep.mubr.bf16.mxu0 0
        %497 = vmatmul.mubr.bf16.gmra.mrb[0].mxu0 %v294
        %v498 = vpop.f32.mrb[0].mxu0
        %v499 = vadd.f32 %v317, %v498
        %v500 = vpop.f32.mrb[0].mxu0
        %v501 = vadd.f32 %v321, %v500
        %v502 = vpop.f32.mrb[0].mxu0
        %v503 = vadd.f32 %v317, %v502
        %v504 = vpop.f32.mrb[0].mxu0
        %v505 = vadd.f32 %v321, %v504
        %506 = vmatprep.mubr.bf16.mxu0 0
        %507 = vmatmul.mubr.bf16.gmra.mrb[0].mxu0 %v295
        %v508 = vpop.f32.mrb[0].mxu0
        %v509 = vadd.f32 %v317, %v508
        %v510 = vpop.f32.mrb[0].mxu0
        %v511 = vadd.f32 %v321, %v510
        %v512 = vpop.f32.mrb[0].mxu0
        %v513 = vadd.f32 %v317, %v512
        %v514 = vpop.f32.mrb[0].mxu0
        %v515 = vadd.f32 %v321, %v514
        %516 = vdwg.mxu0
        %v517 = vpack.c.bf16 %v443, %v439
        %v518 = vpack.c.bf16 %v445, %v441
        %v519 = vpack.c.bf16 %v453, %v449
        %v520 = vpack.c.bf16 %v455, %v451
        %v521 = vpack.c.bf16 %v463, %v459
        %v522 = vpack.c.bf16 %v465, %v461
        %v523 = vpack.c.bf16 %v473, %v469
        %v524 = vpack.c.bf16 %v475, %v471
        %v525 = vpack.c.bf16 %v483, %v479
        %v526 = vpack.c.bf16 %v485, %v481
        %v527 = vpack.c.bf16 %v493, %v489
        %v528 = vpack.c.bf16 %v495, %v491
        %v529 = vpack.c.bf16 %v503, %v499
        %v530 = vpack.c.bf16 %v505, %v501
        %v531 = vpack.c.bf16 %v513, %v509
        %v532 = vpack.c.bf16 %v515, %v511
        %v533 = vtanh.bf16.pop %v517
        %v534 = vtanh.bf16.pop %v519
        %v535 = vtanh.bf16.pop %v521
        %v536 = vtanh.bf16.pop %v523
        %v537 = vtanh.bf16.pop %v525
        %v538 = vtanh.bf16.pop %v527
        %v539 = vtanh.bf16.pop %v529
        %v540 = vtanh.bf16.pop %v531
        %v541 = vmul.bf16 %v518, 1056980736
        %v542 = vmul.bf16 %v520, 1056980736
        %v543 = vmul.bf16 %v522, 1056980736
        %v544 = vmul.bf16 %v524, 1056980736
        %v545 = vmul.bf16 %v526, 1056980736
        %v546 = vmul.bf16 %v528, 1056980736
        %v547 = vmul.bf16 %v530, 1056980736
        %v548 = vmul.bf16 %v532, 1056980736
        %v549 = vtanh.bf16.pop %v541
        %v550 = vtanh.bf16.pop %v542
        %v551 = vtanh.bf16.pop %v543
        %v552 = vtanh.bf16.pop %v544
        %v553 = vtanh.bf16.pop %v545
        %v554 = vtanh.bf16.pop %v546
        %v555 = vtanh.bf16.pop %v547
        %v556 = vtanh.bf16.pop %v548
        %v557 = vadd.bf16 %v549, 1065369472
        %v558 = vadd.bf16 %v550, 1065369472
        %v559 = vadd.bf16 %v551, 1065369472
        %v560 = vadd.bf16 %v552, 1065369472
        %v561 = vadd.bf16 %v553, 1065369472
        %v562 = vadd.bf16 %v554, 1065369472
        %v563 = vadd.bf16 %v555, 1065369472
        %v564 = vadd.bf16 %v556, 1065369472
        %v565 = vmul.bf16 %v557, 1056980736
        %v566 = vmul.bf16 %v558, 1056980736
        %v567 = vmul.bf16 %v559, 1056980736
        %v568 = vmul.bf16 %v560, 1056980736
        %v569 = vmul.bf16 %v561, 1056980736
        %v570 = vmul.bf16 %v562, 1056980736
        %v571 = vmul.bf16 %v563, 1056980736
        %v572 = vmul.bf16 %v564, 1056980736
        %v573 = vmul.bf16 %v533, %v565
        %v574 = vmul.bf16 %v534, %v566
        %v575 = vmul.bf16 %v535, %v567
        %v576 = vmul.bf16 %v536, %v568
        %v577 = vmul.bf16 %v537, %v569
        %v578 = vmul.bf16 %v538, %v570
        %v579 = vmul.bf16 %v539, %v571
        %v580 = vmul.bf16 %v540, %v572
        %v581 = vld [vmem:[%s3] sm:$0x1]
        %v583 = vpack.i.b16 %v581, %v581
        %v585 = vlaneseq
        %v586 = vshrl.u32 %v585, 7
        %v587 = vsub.s32 0, %v586
        %v588 = vrot.slane %v583, %v587
        %v589 = vmul.bf16 %v573, %v588
        %v590 = vmul.bf16 %v574, %v588
        %v591 = vmul.bf16 %v575, %v588
        %v592 = vmul.bf16 %v576, %v588
        %v593 = vmul.bf16 %v577, %v588
        %v594 = vmul.bf16 %v578, %v588
        %v595 = vmul.bf16 %v579, %v588
        %v596 = vmul.bf16 %v580, %v588
        %v597 = vunpack.c.l.bf16 %v589
        %v598 = vunpack.c.h.bf16 %v589
        %v599 = vunpack.c.l.bf16 %v590
        %v600 = vunpack.c.h.bf16 %v590
        %v601 = vunpack.c.l.bf16 %v591
        %v602 = vunpack.c.h.bf16 %v591
        %v603 = vunpack.c.l.bf16 %v592
        %v604 = vunpack.c.h.bf16 %v592
        %v605 = vunpack.c.l.bf16 %v593
        %v606 = vunpack.c.h.bf16 %v593
        %v607 = vunpack.c.l.bf16 %v594
        %v608 = vunpack.c.h.bf16 %v594
        %v609 = vunpack.c.l.bf16 %v595
        %v610 = vunpack.c.h.bf16 %v595
        %v611 = vunpack.c.l.bf16 %v596
        %v612 = vunpack.c.h.bf16 %v596
        %613 = vadd.xlane.f32.xlu0 %v597
        %v614 = vpop.xlane.xlu0 %613
        %615 = vadd.xlane.f32.xlu0 %v598
        %v616 = vpop.xlane.xlu0 %615
        %617 = vadd.xlane.f32.xlu0 %v599
        %v618 = vpop.xlane.xlu0 %617
        %619 = vadd.xlane.f32.xlu0 %v600
        %v620 = vpop.xlane.xlu0 %619
        %621 = vadd.xlane.f32.xlu0 %v601
        %v622 = vpop.xlane.xlu0 %621
        %623 = vadd.xlane.f32.xlu0 %v602
        %v624 = vpop.xlane.xlu0 %623
        %625 = vadd.xlane.f32.xlu0 %v603
        %v626 = vpop.xlane.xlu0 %625
        %627 = vadd.xlane.f32.xlu0 %v604
        %v628 = vpop.xlane.xlu0 %627
        %629 = vadd.xlane.f32.xlu0 %v605
        %v630 = vpop.xlane.xlu0 %629
        %631 = vadd.xlane.f32.xlu0 %v606
        %v632 = vpop.xlane.xlu0 %631
        %633 = vadd.xlane.f32.xlu0 %v607
        %v634 = vpop.xlane.xlu0 %633
        %635 = vadd.xlane.f32.xlu0 %v608
        %v636 = vpop.xlane.xlu0 %635
        %637 = vadd.xlane.f32.xlu0 %v609
        %v638 = vpop.xlane.xlu0 %637
        %639 = vadd.xlane.f32.xlu0 %v610
        %v640 = vpop.xlane.xlu0 %639
        %641 = vadd.xlane.f32.xlu0 %v611
        %v642 = vpop.xlane.xlu0 %641
        %643 = vadd.xlane.f32.xlu0 %v612
        %v644 = vpop.xlane.xlu0 %643
        %v645 = vpack.c.bf16 %v616, %v614
        %v646 = vpack.c.bf16 %v620, %v618
        %v647 = vpack.c.bf16 %v624, %v622
        %v648 = vpack.c.bf16 %v628, %v626
        %v649 = vpack.c.bf16 %v632, %v630
        %v650 = vpack.c.bf16 %v636, %v634
        %v651 = vpack.c.bf16 %v640, %v638
        %v652 = vpack.c.bf16 %v644, %v642
        %v653 = vunpack.c.l.bf16 %v645
        %v654 = vunpack.c.h.bf16 %v645
        %v655 = vunpack.c.l.bf16 %v646
        %v656 = vunpack.c.h.bf16 %v646
        %v657 = vunpack.c.l.bf16 %v647
        %v658 = vunpack.c.h.bf16 %v647
        %v659 = vunpack.c.l.bf16 %v648
        %v660 = vunpack.c.h.bf16 %v648
        %v661 = vunpack.c.l.bf16 %v649
        %v662 = vunpack.c.h.bf16 %v649
        %v663 = vunpack.c.l.bf16 %v650
        %v664 = vunpack.c.h.bf16 %v650
        %v665 = vunpack.c.l.bf16 %v651
        %v666 = vunpack.c.h.bf16 %v651
        %v667 = vunpack.c.l.bf16 %v652
        %v668 = vunpack.c.h.bf16 %v652
        %s669 = sld [smem:[#allocation2]]
        %v670 = vstv %s669
        %v671 = vadd.f32 %v653, %v670
        %v672 = vadd.f32 %v654, %v670
        %v673 = vadd.f32 %v655, %v670
        %v674 = vadd.f32 %v656, %v670
        %v675 = vadd.f32 %v657, %v670
        %v676 = vadd.f32 %v658, %v670
        %v677 = vadd.f32 %v659, %v670
        %v678 = vadd.f32 %v660, %v670
        %v679 = vadd.f32 %v661, %v670
        %v680 = vadd.f32 %v662, %v670
        %v681 = vadd.f32 %v663, %v670
        %v682 = vadd.f32 %v664, %v670
        %v683 = vadd.f32 %v665, %v670
        %v684 = vadd.f32 %v666, %v670
        %v685 = vadd.f32 %v667, %v670
        %v686 = vadd.f32 %v668, %v670
        %v703 = vlaneseq
        %v704 = vand.u32 %v703, 127
        %v705 = vlaneseq
        %v706 = vshrl.u32 %v705, 7
        %v707 = vsub.s32 %v704, %v706
        %v708 = vrot.slane %v671, %v707
        %v709 = vadd.s32 %v704, 4294967288
        %v710 = vlaneseq
        %v711 = vshrl.u32 %v710, 7
        %v712 = vsub.s32 %v709, %v711
        %v713 = vrot.slane %v672, %v712
        %vm714 = vcmask 130112
        %v715 = vsel %vm714, %v713, %v708
        %v716 = vadd.s32 %v704, 4294967280
        %v717 = vlaneseq
        %v718 = vshrl.u32 %v717, 7
        %v719 = vsub.s32 %v716, %v718
        %v720 = vrot.slane %v673, %v719
        %vm721 = vcmask 195712
        %v722 = vsel %vm721, %v720, %v715
        %v723 = vadd.s32 %v704, 4294967272
        %v724 = vlaneseq
        %v725 = vshrl.u32 %v724, 7
        %v726 = vsub.s32 %v723, %v725
        %v727 = vrot.slane %v674, %v726
        %vm728 = vcmask 261312
        %v729 = vsel %vm728, %v727, %v722
        %v730 = vadd.s32 %v704, 4294967264
        %v731 = vlaneseq
        %v732 = vshrl.u32 %v731, 7
        %v733 = vsub.s32 %v730, %v732
        %v734 = vrot.slane %v675, %v733
        %vm735 = vcmask 326912
        %v736 = vsel %vm735, %v734, %v729
        %v737 = vadd.s32 %v704, 4294967256
        %v738 = vlaneseq
        %v739 = vshrl.u32 %v738, 7
        %v740 = vsub.s32 %v737, %v739
        %v741 = vrot.slane %v676, %v740
        %vm742 = vcmask 392512
        %v743 = vsel %vm742, %v741, %v736
        %v744 = vadd.s32 %v704, 4294967248
        %v745 = vlaneseq
        %v746 = vshrl.u32 %v745, 7
        %v747 = vsub.s32 %v744, %v746
        %v748 = vrot.slane %v677, %v747
        %vm749 = vcmask 458112
        %v750 = vsel %vm749, %v748, %v743
        %v751 = vadd.s32 %v704, 4294967240
        %v752 = vlaneseq
        %v753 = vshrl.u32 %v752, 7
        %v754 = vsub.s32 %v751, %v753
        %v755 = vrot.slane %v678, %v754
        %vm756 = vcmask 523712
        %v757 = vsel %vm756, %v755, %v750
        %v758 = vadd.s32 %v704, 4294967232
        %v759 = vlaneseq
        %v760 = vshrl.u32 %v759, 7
        %v761 = vsub.s32 %v758, %v760
        %v762 = vrot.slane %v679, %v761
        %vm763 = vcmask 589312
        %v764 = vsel %vm763, %v762, %v757
        %v765 = vadd.s32 %v704, 4294967224
        %v766 = vlaneseq
        %v767 = vshrl.u32 %v766, 7
        %v768 = vsub.s32 %v765, %v767
        %v769 = vrot.slane %v680, %v768
        %vm770 = vcmask 654912
        %v771 = vsel %vm770, %v769, %v764
        %v772 = vadd.s32 %v704, 4294967216
        %v773 = vlaneseq
        %v774 = vshrl.u32 %v773, 7
        %v775 = vsub.s32 %v772, %v774
        %v776 = vrot.slane %v681, %v775
        %vm777 = vcmask 720512
        %v778 = vsel %vm777, %v776, %v771
        %v779 = vadd.s32 %v704, 4294967208
        %v780 = vlaneseq
        %v781 = vshrl.u32 %v780, 7
        %v782 = vsub.s32 %v779, %v781
        %v783 = vrot.slane %v682, %v782
        %vm784 = vcmask 786112
        %v785 = vsel %vm784, %v783, %v778
        %v786 = vadd.s32 %v704, 4294967200
        %v787 = vlaneseq
        %v788 = vshrl.u32 %v787, 7
        %v789 = vsub.s32 %v786, %v788
        %v790 = vrot.slane %v683, %v789
        %vm791 = vcmask 851712
        %v792 = vsel %vm791, %v790, %v785
        %v793 = vadd.s32 %v704, 4294967192
        %v794 = vlaneseq
        %v795 = vshrl.u32 %v794, 7
        %v796 = vsub.s32 %v793, %v795
        %v797 = vrot.slane %v684, %v796
        %vm798 = vcmask 917312
        %v799 = vsel %vm798, %v797, %v792
        %v800 = vadd.s32 %v704, 4294967184
        %v801 = vlaneseq
        %v802 = vshrl.u32 %v801, 7
        %v803 = vsub.s32 %v800, %v802
        %v804 = vrot.slane %v685, %v803
        %vm805 = vcmask 982912
        %v806 = vsel %vm805, %v804, %v799
        %v807 = vadd.s32 %v704, 4294967176
        %v808 = vlaneseq
        %v809 = vshrl.u32 %v808, 7
        %v810 = vsub.s32 %v807, %v809
        %v811 = vrot.slane %v686, %v810
        %vm812 = vcmask 1048512
        %v813 = vsel %vm812, %v811, %v806
        %815 = vst [vmem:[%s263] sm:$0x1] %v813
        %s816 = sand.u32 %s142, 1
        %s817 = scalar_lea.sflag [#allocation5], %s816
        %s818 = sand.u32 %s142, 1
        %s819 = scalar_lea.vmem [#allocation8], %s818
        // Predicated region
        $region49: #{tpu_custom_call.1} parent=39 // pred_check
          %p820 = pneg %p152
        $region50: #{tpu_custom_call.1} parent=39 // pred_check_branch
          %822 = sbr.rel (%p820) target = $region52
        $region51: #{tpu_custom_call.1} parent=39 // pred_region
          %s824 = ssub.s32 16, 16
          %825 = vsyncadd %s817, %s824
          %s826 = smul.addr %s24, 16
          %s827 = scalar_lea.hbm %s5, %s826
          %s829 = sshll.u32 %s819, 4
          %s830 = int_to_ptr.vmem [resolvable:$true] %s829
          %832 = dma.vmem_to_hbm [thread:$0]  %s830, 16, %s827, %s817
        $region52: #{tpu_custom_call.1} parent=39 // pred_fallthru
          _
      $region40: #{tpu_custom_call.1} parent=5 // pred_fallthru
        _
      %p833 = scmp.le.s32.totalorder 2, %s19
      // Predicated region
      $region53: #{tpu_custom_call.1} parent=5 // pred_check
        %p834 = pneg %p833
      $region54: #{tpu_custom_call.1} parent=5 // pred_check_branch
        %836 = sbr.rel (%p834) target = $region56
      $region55: #{tpu_custom_call.1} parent=5 // pred_region
        %s837 = ssub.s32 %s19, 2
        // Predicated region
        $region57: #{tpu_custom_call.1} parent=55 // pred_check
          %p838 = pneg %p158
        $region58: #{tpu_custom_call.1} parent=55 // pred_check_branch
          %840 = sbr.rel (%p838) target = $region60
        $region59: #{tpu_custom_call.1} parent=55 // pred_region
          %s841 = sand.u32 %s143, 1
          %s842 = scalar_lea.sflag [#allocation5], %s841
          %s843 = sand.u32 %s143, 1
          %s844 = scalar_lea.vmem [#allocation8], %s843
          %845 = dma.done %s842, 16
        $region60: #{tpu_custom_call.1} parent=55 // pred_fallthru
          _
      $region56: #{tpu_custom_call.1} parent=5 // pred_fallthru
        _
    $region6: #{tpu_custom_call.1} parent=1 // loop_footer
      %s23 = sadd.s32 1, %s19
    $region7: #{tpu_custom_call.1} parent=1 // loop_footer_branch
      %18 = sbr.rel target = $region3
    $region8: #{tpu_custom_call.1} parent=1 // loop_exit
      _
    %846 = vsyncpa [#allocation4], 1
    %s847 = scalar_lea.sflag [#allocation4], 1
    %848 = vsyncpa %s847, 1
    %849 = vsyncpa [#allocation7], 1
    %850 = vsyncpa [#allocation5], 1
    %s851 = scalar_lea.sflag [#allocation5], 1
    %852 = vsyncpa %s851, 1

</llo_original>
